<compile_context>
chip_gen: v7x
topology: tpu7x:2x2x1
jax: 0.10.0
libtpu: 0.0.40
codegen_flags: <defaults>
</compile_context>

<pallas_src>
import functools

import jax
import jax.numpy as jnp
from jax.experimental import pallas as pl
from jax.experimental.pallas import tpu as pltpu


def _round_up(x, k):
    return -(-x // k) * k


# ---------------------------------------------------------------------------
# Kernel 1: encoder — conv3x3-as-matmul + ReLU + per-image global-average-pool
# ---------------------------------------------------------------------------

def _encoder_kernel(p_ref, wc_ref, bc_ref, feat_ref, *, imgs_per_tile, hw):
    # (tm, Kp) bf16 patches @ (Kp, Dp) bf16 weight -> f32 accum, + bias, ReLU.
    y = jnp.dot(p_ref[...], wc_ref[...], preferred_element_type=jnp.float32)
    y = jnp.maximum(y + bc_ref[...], 0.0)
    # Segmented GAP as ONE reshape+reduce (hw is a multiple of 8 here, so the
    # reshape does not cross (8,128) tiles); stored directly to the lane-dense
    # (imgs_per_tile, Dp) output block.
    dp = y.shape[-1]
    feat_ref[...] = jnp.mean(y.reshape(imgs_per_tile, hw, dp), axis=1)


# ---------------------------------------------------------------------------
# Kernel 2: epilogue — hallucinator + prototype mean + cosine logits
# ---------------------------------------------------------------------------

def _epilogue_kernel(feat_ref, noise_ref, whs_ref, whn_ref, bh_ref,
                     seed_ref, imag_ref, logits_ref,
                     *, num_way, num_shot, num_query, m):
    dp = feat_ref.shape[-1]
    feats = feat_ref[...]                                    # (n_img_pad, Dp) f32
    n_shot_rows = num_shot * num_way

    # TODO(synk): seed selection assumes num_shot == 1 (the reference's
    # expand() only type-checks then); randperm(1) is the identity.
    shot_feats = feats[0:num_way, :]                         # (num_way, Dp)
    q_feats = feats[n_shot_rows:n_shot_rows + num_query, :]  # (num_query, Dp)

    # seed = proto_s[ind] broadcast over the m hallucination groups (no concat).
    shot_tile = jnp.broadcast_to(
        shot_feats[None, :, :], (m, num_way, dp)).reshape(m * num_way, dp)
    seed_ref[...] = shot_tile

    # Hallucinator: relu([seed, noise] @ Wh + bh), batched over all m groups as
    # two full-width MXU pushes (Wh split into its seed / noise halves).
    h = jnp.dot(shot_tile.astype(jnp.bfloat16), whs_ref[...],
                preferred_element_type=jnp.float32)
    h = h + jnp.dot(noise_ref[...].astype(jnp.bfloat16), whn_ref[...],
                    preferred_element_type=jnp.float32)
    h = jnp.maximum(h + bh_ref[...], 0.0)                    # (m*num_way, Dp)
    imag_ref[...] = h

    # Prototype: mean over num_shot real groups + m hallucinated groups.
    proto = feats[0:n_shot_rows, :].reshape(num_shot, num_way, dp).sum(axis=0)
    proto = proto + h.reshape(m, num_way, dp).sum(axis=0)
    proto = proto * (1.0 / float(num_shot + m))

    # Cosine-similarity logits (f32 normalization, EUP rsqrt, no transpose).
    qn = q_feats * jax.lax.rsqrt(
        jnp.sum(q_feats * q_feats, axis=-1, keepdims=True) + 1e-12)
    pn = proto * jax.lax.rsqrt(
        jnp.sum(proto * proto, axis=-1, keepdims=True) + 1e-12)
    logits_ref[...] = jax.lax.dot_general(
        qn, pn, dimension_numbers=(((1,), (1,)), ((), ())),
        preferred_element_type=jnp.float32)


# ---------------------------------------------------------------------------
# Wrapper
# ---------------------------------------------------------------------------

def _im2col(x_nchw):
    """3x3, stride 1, pad 1 patches: (N, H*W, C*9), kernel index = dh*3 + dw."""
    N, C, H, W = x_nchw.shape
    xp = jnp.pad(x_nchw, ((0, 0), (0, 0), (1, 1), (1, 1)))
    cols = [xp[:, :, dh:dh + H, dw:dw + W]
            for dh in range(3) for dw in range(3)]
    p = jnp.stack(cols, axis=-1)                      # (N, C, H, W, 9)
    return p.transpose(0, 2, 3, 1, 4).reshape(N, H * W, C * 9)


def afhn_forward(shots, query, num_way, params, m, rng):
    w_conv, b_conv = params["w_conv"], params["b_conv"]
    w_hall, b_hall = params["w_hall"], params["b_hall"]
    D = w_conv.shape[0]
    C, H, W = shots.shape[1:]
    num_shot = shots.shape[0] // num_way
    num_query = query.shape[0]
    assert num_shot == 1, "reference expand() semantics require num_shot == 1"

    hw = H * W
    K = C * 9
    n_img = shots.shape[0] + num_query
    Kp = _round_up(K, 128)          # lane-dense patch width (27 -> 128)
    Dp = _round_up(D, 128)          # lane-dense feature dim (32 -> 128)

    # --- glue: RNG (torch.randperm / torch.rand_like equivalents) ---
    k_perm, k_noise = jax.random.split(rng)
    _ = jax.random.permutation(k_perm, num_shot)      # identity for num_shot==1
    noise = jax.random.uniform(k_noise, (m, num_way, D), jnp.float32)

    # --- tile selection: whole images per grid step, image count a multiple of
    # 8 (so the (imgs_per_tile, Dp) f32 feature block is (8,128)-tiled); target
    # ~4096 patch rows per step, but keep >=2 parallel steps when possible so
    # both v7x TensorCores get encoder work.
    imgs_per_tile = max(8, (4096 // hw) // 8 * 8)
    n_img_pad = _round_up(n_img, imgs_per_tile)
    if n_img_pad // imgs_per_tile == 1 and imgs_per_tile % 16 == 0:
        imgs_per_tile //= 2
    num_tiles = n_img_pad // imgs_per_tile
    tm = imgs_per_tile * hw

    # --- glue: im2col over shots+query in ONE batch, zero-padded to
    # (n_img_pad*hw, Kp) and cast to bf16 for the MXU feed ---
    x = jnp.concatenate([shots, query], axis=0)
    p = _im2col(x).reshape(n_img * hw, K)
    p = jnp.pad(p, ((0, n_img_pad * hw - n_img * hw), (0, Kp - K)))
    p = p.astype(jnp.bfloat16)

    w_mat = w_conv.transpose(1, 2, 3, 0).reshape(K, D)
    w_mat = jnp.pad(w_mat, ((0, Kp - K), (0, Dp - D))).astype(jnp.bfloat16)
    b_mat = jnp.pad(b_conv.reshape(1, D),
                    ((0, 0), (0, Dp - D))).astype(jnp.float32)

    whs = jnp.pad(w_hall[:D, :], ((0, Dp - D), (0, Dp - D))).astype(jnp.bfloat16)
    whn = jnp.pad(w_hall[D:, :], ((0, Dp - D), (0, Dp - D))).astype(jnp.bfloat16)
    bh = jnp.pad(b_hall.reshape(1, D),
                 ((0, 0), (0, Dp - D))).astype(jnp.float32)
    noise_p = jnp.pad(noise.reshape(m * num_way, D),
                      ((0, 0), (0, Dp - D))).astype(jnp.float32)

    # --- kernel 1: encoder over a parallel image-tile grid ---
    enc_flops = 2 * n_img_pad * hw * Kp * Dp
    enc_bytes = (p.size * 2 + w_mat.size * 2 + b_mat.size * 4
                 + n_img_pad * Dp * 4)
    feats = pl.pallas_call(
        functools.partial(_encoder_kernel, imgs_per_tile=imgs_per_tile, hw=hw),
        out_shape=jax.ShapeDtypeStruct((n_img_pad, Dp), jnp.float32),
        grid=(num_tiles,),
        in_specs=[
            pl.BlockSpec((tm, Kp), lambda i: (i, 0)),     # patches (row-tiled)
            pl.BlockSpec((Kp, Dp), lambda i: (0, 0)),     # conv weight
            pl.BlockSpec((1, Dp), lambda i: (0, 0)),      # conv bias
        ],
        out_specs=pl.BlockSpec((imgs_per_tile, Dp), lambda i: (i, 0)),
        compiler_params=pltpu.CompilerParams(
            dimension_semantics=("parallel",),            # v7x: shard over 2 TCs
            vmem_limit_bytes=32 * 1024 * 1024),
        cost_estimate=pl.CostEstimate(flops=int(enc_flops), transcendentals=0,
                                      bytes_accessed=int(enc_bytes)),
    )(p, w_mat, b_mat)

    # --- kernel 2: epilogue (hallucinator + prototype + cosine logits) ---
    epi_flops = (2 * (m * num_way) * Dp * Dp * 2
                 + 2 * num_query * Dp * num_way)
    epi_bytes = (feats.size * 4 + noise_p.size * 4 + whs.size * 2 + whn.size * 2
                 + bh.size * 4
                 + (2 * m * num_way * Dp + num_query * num_way) * 4)
    seed2d, imag2d, logits = pl.pallas_call(
        functools.partial(_epilogue_kernel, num_way=num_way, num_shot=num_shot,
                          num_query=num_query, m=m),
        out_shape=(
            jax.ShapeDtypeStruct((m * num_way, Dp), jnp.float32),     # seed
            jax.ShapeDtypeStruct((m * num_way, Dp), jnp.float32),     # imaginary
            jax.ShapeDtypeStruct((num_query, num_way), jnp.float32),  # logits
        ),
        grid=(1,),
        in_specs=[
            pl.BlockSpec((n_img_pad, Dp), lambda i: (0, 0)),    # GAP features
            pl.BlockSpec((m * num_way, Dp), lambda i: (0, 0)),  # noise
            pl.BlockSpec((Dp, Dp), lambda i: (0, 0)),           # Wh (seed half)
            pl.BlockSpec((Dp, Dp), lambda i: (0, 0)),           # Wh (noise half)
            pl.BlockSpec((1, Dp), lambda i: (0, 0)),            # bh
        ],
        out_specs=(
            pl.BlockSpec((m * num_way, Dp), lambda i: (0, 0)),
            pl.BlockSpec((m * num_way, Dp), lambda i: (0, 0)),
            pl.BlockSpec((num_query, num_way), lambda i: (0, 0)),
        ),
        compiler_params=pltpu.CompilerParams(
            dimension_semantics=("arbitrary",),
            vmem_limit_bytes=32 * 1024 * 1024),
        cost_estimate=pl.CostEstimate(flops=int(epi_flops),
                                      transcendentals=int(num_query + num_way),
                                      bytes_accessed=int(epi_bytes)),
    )(feats, noise_p, whs, whn, bh)

    # Slice the zero-padded feature columns back to the real hidden dim.
    seed = seed2d[:, :D].reshape(m, num_way, D)
    imaginary = imag2d[:, :D].reshape(m, num_way, D)
    return logits, seed, imaginary, noise


# ---------------------------------------------------------------------------
# Main
# ---------------------------------------------------------------------------

if __name__ == "__main__":
    hid_dim = 32
    m = 2                 # hallucinated samples per class
    num_way = 4
    num_shot = 1          # expand() in the reference requires num_shot == 1
    num_query = 8
    C, H, W = 3, 16, 16

    key = jax.random.PRNGKey(0)
    k_shot, k_query, k_wc, k_wh, k_fwd = jax.random.split(key, 5)

    shots = jax.random.normal(k_shot, (num_way * num_shot, C, H, W), jnp.float32)
    query = jax.random.normal(k_query, (num_query, C, H, W), jnp.float32)

    # Parameters (deterministic). Conv weight ~ N(0, 0.02) per init_weights;
    # conv bias untouched by init_weights -> zeros for determinism.
    params = {
        "w_conv": 0.02 * jax.random.normal(k_wc, (hid_dim, C, 3, 3), jnp.float32),
        "b_conv": jnp.zeros((hid_dim,), jnp.float32),
        # TODO(synk): real hallucinator module is injected in the original code
        # and its architecture is not given; synthesized as Linear(2D->D)+ReLU.
        "w_hall": 0.02 * jax.random.normal(k_wh, (2 * hid_dim, hid_dim), jnp.float32),
        "b_hall": jnp.zeros((hid_dim,), jnp.float32),
    }

    logits, seed, imaginary, noise = afhn_forward(
        shots, query, num_way, params, m, k_fwd)
    jax.block_until_ready((logits, seed, imaginary, noise))

    assert logits.shape == (num_query, num_way)
    assert seed.shape == (m, num_way, hid_dim)
    assert imaginary.shape == (m, num_way, hid_dim)
    assert noise.shape == (m, num_way, hid_dim)
    print("KERNEL_OK")
</pallas_src>

<mosaic_0001>
module attributes {stable_mosaic.version = 11 : i64} {
  func.func @_encoder_kernel(%arg0: i32, %arg1: memref<2048x128xbf16, #tpu.memory_space<vmem>>, %arg2: memref<128x128xbf16, #tpu.memory_space<vmem>>, %arg3: memref<1x128xf32, #tpu.memory_space<vmem>>, %arg4: memref<8x128xf32, #tpu.memory_space<vmem>>) attributes {dimension_semantics = [#tpu.dimension_semantics<parallel>], iteration_bounds = array<i64: 2>, scalar_prefetch = 0 : i64, scratch_operands = 0 : i64, tpu.core_type = #tpu.core_type<tc>, window_params = [{transform_indices = @transform_0, window_bounds = array<i64: 2048, 128>}, {pipeline_mode = #tpu.pipeline_mode<synchronous>, transform_indices = @transform_1, window_bounds = array<i64: 128, 128>}, {pipeline_mode = #tpu.pipeline_mode<synchronous>, transform_indices = @transform_2, window_bounds = array<i64: 1, 128>}, {transform_indices = @transform_3, window_bounds = array<i64: 8, 128>}]} {
    %c0 = arith.constant 0 : index
    %c0_0 = arith.constant 0 : index
    %0 = vector.load %arg1[%c0, %c0_0] : memref<2048x128xbf16, #tpu.memory_space<vmem>>, vector<2048x128xbf16>
    %c0_1 = arith.constant 0 : index
    %c0_2 = arith.constant 0 : index
    %1 = vector.load %arg2[%c0_1, %c0_2] : memref<128x128xbf16, #tpu.memory_space<vmem>>, vector<128x128xbf16>
    %cst = arith.constant dense<0.000000e+00> : vector<2048x128xf32>
    %2 = tpu.matmul %0, %1, %cst {dimension_numbers = #tpu.dot_dimension_numbers<[1], [0], [0], [1], [0, 0, 1, 1], [], []>} : vector<2048x128xbf16>, vector<128x128xbf16>, vector<2048x128xf32> -> vector<2048x128xf32>
    %c0_3 = arith.constant 0 : index
    %c0_4 = arith.constant 0 : index
    %3 = vector.load %arg3[%c0_3, %c0_4] : memref<1x128xf32, #tpu.memory_space<vmem>>, vector<1x128xf32>
    %4 = vector.broadcast %3 : vector<1x128xf32> to vector<2048x128xf32>
    %5 = arith.addf %2, %4 : vector<2048x128xf32>
    %cst_5 = arith.constant 0.000000e+00 : f32
    %6 = vector.broadcast %cst_5 : f32 to vector<2048x128xf32>
    %7 = arith.maximumf %5, %6 : vector<2048x128xf32>
    %8 = vector.shape_cast %7 : vector<2048x128xf32> to vector<8x256x128xf32>
    %cst_6 = arith.constant dense<0.000000e+00> : vector<8x128xf32>
    %9 = vector.multi_reduction <add>, %8, %cst_6 [1] : vector<8x256x128xf32> to vector<8x128xf32>
    %cst_7 = arith.constant 2.560000e+02 : f32
    %10 = vector.broadcast %cst_7 : f32 to vector<8x128xf32>
    %11 = arith.divf %9, %10 : vector<8x128xf32>
    %c0_8 = arith.constant 0 : index
    %c0_9 = arith.constant 0 : index
    %12 = vector.load %arg4[%c0_8, %c0_9] : memref<8x128xf32, #tpu.memory_space<vmem>>, vector<8x128xf32>
    tpu.vector_store %arg4[%c0_8, %c0_9], %11 {strides = array<i32>} : memref<8x128xf32, #tpu.memory_space<vmem>>, vector<8x128xf32>,
    return
  }
  func.func @transform_0(%arg0: i32) -> (i32, i32) {
    %c0_i32 = arith.constant 0 : i32
    %c0_i32_0 = arith.constant 0 : i32
    return %arg0, %c0_i32 : i32, i32
  }
  func.func @transform_1(%arg0: i32) -> (i32, i32) {
    %c0_i32 = arith.constant 0 : i32
    %c0_i32_0 = arith.constant 0 : i32
    %c0_i32_1 = arith.constant 0 : i32
    return %c0_i32, %c0_i32_0 : i32, i32
  }
  func.func @transform_2(%arg0: i32) -> (i32, i32) {
    %c0_i32 = arith.constant 0 : i32
    %c0_i32_0 = arith.constant 0 : i32
    %c0_i32_1 = arith.constant 0 : i32
    return %c0_i32, %c0_i32_0 : i32, i32
  }
  func.func @transform_3(%arg0: i32) -> (i32, i32) {
    %c0_i32 = arith.constant 0 : i32
    %c0_i32_0 = arith.constant 0 : i32
    return %arg0, %c0_i32 : i32, i32
  }
}

</mosaic_0001>

<llo_original>
// kernel: tpu_custom_call.1
$region0: #{tpu_custom_call.1}
  #allocation0 [shape = 'u32[]', space=smem, size = 0x4, offset = 0x4, fixed_abs, tag = 'smem constant byte address 0x4 - core index']
  #allocation1 [shape = 'u32[144,128]{1,0:T(1,128)}', space=vmem, size = 0x12000, scoped, tag = 'internal scratch']
  %s0 = inlined_call_operand.hbm [shape: bf16[4096,128], index: 0, kind: input, shape index: {}]
  %s1 = inlined_call_operand.hbm [shape: bf16[128,128], index: 1, kind: input, shape index: {}]
  %s2 = inlined_call_operand.vmem [shape: f32[1,128], index: 2, kind: input, shape index: {}]
  %s3 = inlined_call_operand.hbm [shape: f32[16,128], index: 3, kind: output, shape index: {}]
  %s4 = sld [smem:[#allocation0]]
  $region53: #{tpu_custom_call.1} parent=0
    _
  %s6 = ssub.s32 1, %s4
  %s7 = scalar_select 0, %s6, %s4
  $region1: #{tpu_custom_call.1} parent=0
    #allocation2 [shape = 'u8[1048576]{0}', space=vmem, size = 0x100000, scoped, tag = 'input window, operand 0']
    #allocation3 [shape = 's32[2]{0}', space=sflag, size = 0x8, scoped, tag = 'scoped memory for tpu_custom_call.1']
    #allocation4 [shape = 's32[2]{0}', space=sflag, size = 0x8, scoped, tag = 'scoped memory for tpu_custom_call.1']
    #allocation5 [shape = 'u8[32768]{0}', space=vmem, size = 0x8000, scoped, tag = 'input window, operand 1, single buffered']
    #allocation6 [shape = 's32[1]{0}', space=sflag, size = 0x4, scoped, tag = 'scoped memory for tpu_custom_call.1']
    #allocation7 [shape = 'u8[8192]{0}', space=vmem, size = 0x2000, scoped, tag = 'output window, operand 0']
    %8 = vsyncpa [#allocation3], 0
    %s9 = scalar_lea.sflag [#allocation3], 1
    %10 = vsyncpa %s9, 0
    %11 = vsyncpa [#allocation6], 0
    %12 = vsyncpa [#allocation4], 0
    %s13 = scalar_lea.sflag [#allocation4], 1
    %14 = vsyncpa %s13, 0
    loop: start=0, step=1, limit=4
    $region2: #{tpu_custom_call.1} parent=1 // loop_pre_header
      _
    $region3: #{tpu_custom_call.1} parent=1 // loop_header
      %s16 = sphi 0, %s20
      %p17 = scmp.ge.s32.totalorder %s16, 4
      %s26 = sphi 0, %s28
      %s29 = sphi 0, %s26
      %s30 = sphi 0, %s29
      %s46 = sphi 0, %s30
      %s50 = sphi 0, %s50
      %s52 = sphi 0, %s50
      %s53 = sphi 0, %s52
      %s67 = sphi 0, %s53
      %s71 = sphi 0, %s71
      %s73 = sphi 0, %s71
      %s74 = sphi 0, %s73
      %s88 = sphi 0, %s74
      %s94 = sphi 0, %s96
      %s97 = sphi 0, %s94
      %s98 = sphi 0, %s97
      %s114 = sphi 0, %s98
    $region4: #{tpu_custom_call.1} parent=1 // loop_header_branch
      %19 = sbr.rel (%p17) target = $region8
    $region5: #{tpu_custom_call.1} parent=1 // loop_body
      %s21 = ssub.s32 %s16, 1
      %s22 = ssub.s32 %s16, 2
      %s23 = sadd.s32 %s16, 1
      %s24 = ssub.s32 %s16, %s23
      %p25 = scmp.eq.s32.totalorder %s24, 0
      %s27 = sadd.s32 %s26, 1
      %s28 = scalar_select %p25, %s26, %s27
      %p31 = pneg %p25
      %p32 = scmp.eq.s32.totalorder %s16, 1
      %p33 = por %p31, %p32
      %p34 = scmp.ne.s32.totalorder %s26, %s29
      %p35 = scmp.eq.s32.totalorder %s16, 0
      %p36 = por %p34, %p35
      %p37 = scmp.ne.s32.totalorder %s26, %s29
      %p38 = scmp.eq.s32.totalorder %s21, 1
      %p39 = por %p37, %p38
      %p40 = scmp.ne.s32.totalorder %s29, %s30
      %p41 = scmp.eq.s32.totalorder %s21, 0
      %p42 = por %p40, %p41
      %p43 = scmp.ne.s32.totalorder %s29, %s30
      %p44 = scmp.eq.s32.totalorder %s22, 1
      %p45 = por %p43, %p44
      %p47 = scmp.ne.s32.totalorder %s30, %s46
      %p48 = scmp.eq.s32.totalorder %s22, 0
      %p49 = por %p47, %p48
      %s51 = sadd.s32 %s50, 1
      %p54 = scmp.eq.s32.totalorder %s16, 1
      %p55 = scmp.ne.s32.totalorder %s50, %s52
      %p56 = scmp.eq.s32.totalorder %s16, 0
      %p57 = por %p55, %p56
      %p58 = scmp.ne.s32.totalorder %s50, %s52
      %p59 = scmp.eq.s32.totalorder %s21, 1
      %p60 = por %p58, %p59
      %p61 = scmp.ne.s32.totalorder %s52, %s53
      %p62 = scmp.eq.s32.totalorder %s21, 0
      %p63 = por %p61, %p62
      %p64 = scmp.ne.s32.totalorder %s52, %s53
      %p65 = scmp.eq.s32.totalorder %s22, 1
      %p66 = por %p64, %p65
      %p68 = scmp.ne.s32.totalorder %s53, %s67
      %p69 = scmp.eq.s32.totalorder %s22, 0
      %p70 = por %p68, %p69
      %s72 = sadd.s32 %s71, 1
      %p75 = scmp.eq.s32.totalorder %s16, 1
      %p76 = scmp.ne.s32.totalorder %s71, %s73
      %p77 = scmp.eq.s32.totalorder %s16, 0
      %p78 = por %p76, %p77
      %p79 = scmp.ne.s32.totalorder %s71, %s73
      %p80 = scmp.eq.s32.totalorder %s21, 1
      %p81 = por %p79, %p80
      %p82 = scmp.ne.s32.totalorder %s73, %s74
      %p83 = scmp.eq.s32.totalorder %s21, 0
      %p84 = por %p82, %p83
      %p85 = scmp.ne.s32.totalorder %s73, %s74
      %p86 = scmp.eq.s32.totalorder %s22, 1
      %p87 = por %p85, %p86
      %p89 = scmp.ne.s32.totalorder %s74, %s88
      %p90 = scmp.eq.s32.totalorder %s22, 0
      %p91 = por %p89, %p90
      %s92 = ssub.s32 %s16, %s23
      %p93 = scmp.eq.s32.totalorder %s92, 0
      %s95 = sadd.s32 %s94, 1
      %s96 = scalar_select %p93, %s94, %s95
      %p99 = pneg %p93
      %p100 = scmp.eq.s32.totalorder %s16, 1
      %p101 = por %p99, %p100
      %p102 = scmp.ne.s32.totalorder %s94, %s97
      %p103 = scmp.eq.s32.totalorder %s16, 0
      %p104 = por %p102, %p103
      %p105 = scmp.ne.s32.totalorder %s94, %s97
      %p106 = scmp.eq.s32.totalorder %s21, 1
      %p107 = por %p105, %p106
      %p108 = scmp.ne.s32.totalorder %s97, %s98
      %p109 = scmp.eq.s32.totalorder %s21, 0
      %p110 = por %p108, %p109
      %p111 = scmp.ne.s32.totalorder %s97, %s98
      %p112 = scmp.eq.s32.totalorder %s22, 1
      %p113 = por %p111, %p112
      %p115 = scmp.ne.s32.totalorder %s98, %s114
      %p116 = scmp.eq.s32.totalorder %s22, 0
      %p117 = por %p115, %p116
      %p118 = scmp.le.s32.totalorder 1, %s16
      %p119 = scmp.lt.s32.totalorder %s16, 3
      %p120 = pnand %p118, %p119
      %p121 = pneg %p120
      // Predicated region
      $region9: #{tpu_custom_call.1} parent=5 // pred_check
        _
      $region10: #{tpu_custom_call.1} parent=5 // pred_check_branch
        %123 = sbr.rel (%p120) target = $region12
      $region11: #{tpu_custom_call.1} parent=5 // pred_region
        %s124 = ssub.s32 %s16, 1
        // Predicated region
        $region13: #{tpu_custom_call.1} parent=11 // pred_check
          %p125 = pneg %p63
        $region14: #{tpu_custom_call.1} parent=11 // pred_check_branch
          %127 = sbr.rel (%p125) target = $region16
        $region15: #{tpu_custom_call.1} parent=11 // pred_region
          %s129 = ssub.s32 1024, 1024
          %130 = vsyncadd [#allocation6], %s129
          %s131 = sshll.u32 [#allocation5], 4
          %s132 = int_to_ptr.vmem [resolvable:$true] %s131
          %137 = dma.hbm_to_vmem [thread:$0]  %s1, 1024, %s132, [#allocation6], 64, 64, 4
        $region16: #{tpu_custom_call.1} parent=11 // pred_fallthru
          _
        // Predicated region
        $region17: #{tpu_custom_call.1} parent=11 // pred_check
          %p138 = pneg %p84
        $region18: #{tpu_custom_call.1} parent=11 // pred_check_branch
          %140 = sbr.rel (%p138) target = $region20
        $region19: #{tpu_custom_call.1} parent=11 // pred_region
          _
        $region20: #{tpu_custom_call.1} parent=11 // pred_fallthru
          _
      $region12: #{tpu_custom_call.1} parent=5 // pred_fallthru
        _
      %p141 = scmp.lt.s32.totalorder %s16, 2
      // Predicated region
      $region21: #{tpu_custom_call.1} parent=5 // pred_check
        %p142 = pneg %p141
      $region22: #{tpu_custom_call.1} parent=5 // pred_check_branch
        %144 = sbr.rel (%p142) target = $region24
      $region23: #{tpu_custom_call.1} parent=5 // pred_region
        // Predicated region
        $region25: #{tpu_custom_call.1} parent=23 // pred_check
          %p145 = pneg %p36
        $region26: #{tpu_custom_call.1} parent=23 // pred_check_branch
          %147 = sbr.rel (%p145) target = $region28
        $region27: #{tpu_custom_call.1} parent=23 // pred_region
          %s148 = sand.u32 %s26, 1
          %s149 = scalar_lea.sflag [#allocation3], %s148
          %s150 = sand.u32 %s26, 1
          %s151 = smul.addr %s150, 1024
          %s152 = scalar_lea.vmem [#allocation2], %s151
          %s153 = smul.u32 256, %s16
          %s155 = ssub.s32 16384, 16384
          %156 = vsyncadd %s149, %s155
          %s157 = smul.addr %s153, 64
          %s158 = scalar_lea.hbm %s0, %s157
          %s159 = sshll.u32 %s152, 4
          %s160 = int_to_ptr.vmem [resolvable:$true] %s159
          %165 = dma.hbm_to_vmem [thread:$0]  %s158, 16384, %s160, %s149, 64, 64, 4
        $region28: #{tpu_custom_call.1} parent=23 // pred_fallthru
          _
      $region24: #{tpu_custom_call.1} parent=5 // pred_fallthru
        _
      %p166 = scmp.le.s32.totalorder 1, %s16
      %p167 = scmp.lt.s32.totalorder %s16, 3
      %p168 = pnand %p166, %p167
      %p169 = pneg %p168
      // Predicated region
      $region29: #{tpu_custom_call.1} parent=5 // pred_check
        _
      $region30: #{tpu_custom_call.1} parent=5 // pred_check_branch
        %171 = sbr.rel (%p168) target = $region32
      $region31: #{tpu_custom_call.1} parent=5 // pred_region
        %s172 = ssub.s32 %s16, 1
        %s173 = sand.u32 %s29, 1
        %s174 = scalar_lea.sflag [#allocation3], %s173
        %s175 = sand.u32 %s29, 1
        %s176 = smul.addr %s175, 1024
        %s177 = scalar_lea.vmem [#allocation2], %s176
        // Predicated region
        $region33: #{tpu_custom_call.1} parent=31 // pred_check
          %p178 = pneg %p42
        $region34: #{tpu_custom_call.1} parent=31 // pred_check_branch
          %180 = sbr.rel (%p178) target = $region36
        $region35: #{tpu_custom_call.1} parent=31 // pred_region
          %181 = dma.done %s174, 16384
        $region36: #{tpu_custom_call.1} parent=31 // pred_fallthru
          _
        // Predicated region
        $region37: #{tpu_custom_call.1} parent=31 // pred_check
          %p182 = pneg %p63
        $region38: #{tpu_custom_call.1} parent=31 // pred_check_branch
          %184 = sbr.rel (%p182) target = $region40
        $region39: #{tpu_custom_call.1} parent=31 // pred_region
          %185 = dma.done [#allocation6], 1024
        $region40: #{tpu_custom_call.1} parent=31 // pred_fallthru
          _
        %s186 = sand.u32 %s29, 1
        %s187 = scalar_lea.sflag [#allocation3], %s186
        %s188 = sand.u32 %s29, 1
        %s189 = smul.addr %s188, 1024
        %s190 = scalar_lea.vmem [#allocation2], %s189
        %p191 = pneg %p42
        %p192 = pneg %p39
        %p193 = pneg %p63
        %p194 = pneg %p60
        %p195 = pneg %p84
        %p196 = pneg %p81
        %p197 = pneg %p110
        %p198 = pneg %p107
        %s199 = sand.u32 %s97, 1
        %s200 = scalar_lea.sflag [#allocation4], %s199
        %s201 = sand.u32 %s97, 1
        %s202 = smul.addr %s201, 8
        %s203 = scalar_lea.vmem [#allocation7], %s202
        %s204 = smul.u32 256, %s21
        %v206 = vld [vmem:[%s177] sm:$0xf]
        %v207 = vld [vmem:[%s177 + $0x4] sm:$0xf]
        %v208 = vld [vmem:[%s177 + $0x8] sm:$0xf]
        %v209 = vld [vmem:[%s177 + $0xc] sm:$0xf]
        %v210 = vld [vmem:[%s177 + $0x10] sm:$0xf]
        %v211 = vld [vmem:[%s177 + $0x14] sm:$0xf]
        %v212 = vld [vmem:[%s177 + $0x18] sm:$0xf]
        %v213 = vld [vmem:[%s177 + $0x1c] sm:$0xf]
        %v214 = vld [vmem:[%s177 + $0x20] sm:$0xf]
        %v215 = vld [vmem:[%s177 + $0x24] sm:$0xf]
        %v216 = vld [vmem:[%s177 + $0x28] sm:$0xf]
        %v217 = vld [vmem:[%s177 + $0x2c] sm:$0xf]
        %v218 = vld [vmem:[%s177 + $0x30] sm:$0xf]
        %v219 = vld [vmem:[%s177 + $0x34] sm:$0xf]
        %v220 = vld [vmem:[%s177 + $0x38] sm:$0xf]
        %v221 = vld [vmem:[%s177 + $0x3c] sm:$0xf]
        %v222 = vld [vmem:[%s177 + $0x40] sm:$0xf]
        %v223 = vld [vmem:[%s177 + $0x44] sm:$0xf]
        %v224 = vld [vmem:[%s177 + $0x48] sm:$0xf]
        %v225 = vld [vmem:[%s177 + $0x4c] sm:$0xf]
        %v226 = vld [vmem:[%s177 + $0x50] sm:$0xf]
        %v227 = vld [vmem:[%s177 + $0x54] sm:$0xf]
        %v228 = vld [vmem:[%s177 + $0x58] sm:$0xf]
        %v229 = vld [vmem:[%s177 + $0x5c] sm:$0xf]
        %v230 = vld [vmem:[%s177 + $0x60] sm:$0xf]
        %v231 = vld [vmem:[%s177 + $0x64] sm:$0xf]
        %v232 = vld [vmem:[%s177 + $0x68] sm:$0xf]
        %v233 = vld [vmem:[%s177 + $0x6c] sm:$0xf]
        %v234 = vld [vmem:[%s177 + $0x70] sm:$0xf]
        %v235 = vld [vmem:[%s177 + $0x74] sm:$0xf]
        %v236 = vld [vmem:[%s177 + $0x78] sm:$0xf]
        %v237 = vld [vmem:[%s177 + $0x7c] sm:$0xf]
        %v238 = vld [vmem:[%s177 + $0x80] sm:$0xf]
        %v239 = vld [vmem:[%s177 + $0x84] sm:$0xf]
        %v240 = vld [vmem:[%s177 + $0x88] sm:$0xf]
        %v241 = vld [vmem:[%s177 + $0x8c] sm:$0xf]
        %v242 = vld [vmem:[%s177 + $0x90] sm:$0xf]
        %v243 = vld [vmem:[%s177 + $0x94] sm:$0xf]
        %v244 = vld [vmem:[%s177 + $0x98] sm:$0xf]
        %v245 = vld [vmem:[%s177 + $0x9c] sm:$0xf]
        %v246 = vld [vmem:[%s177 + $0xa0] sm:$0xf]
        %v247 = vld [vmem:[%s177 + $0xa4] sm:$0xf]
        %v248 = vld [vmem:[%s177 + $0xa8] sm:$0xf]
        %v249 = vld [vmem:[%s177 + $0xac] sm:$0xf]
        %v250 = vld [vmem:[%s177 + $0xb0] sm:$0xf]
        %v251 = vld [vmem:[%s177 + $0xb4] sm:$0xf]
        %v252 = vld [vmem:[%s177 + $0xb8] sm:$0xf]
        %v253 = vld [vmem:[%s177 + $0xbc] sm:$0xf]
        %v254 = vld [vmem:[%s177 + $0xc0] sm:$0xf]
        %v255 = vld [vmem:[%s177 + $0xc4] sm:$0xf]
        %v256 = vld [vmem:[%s177 + $0xc8] sm:$0xf]
        %v257 = vld [vmem:[%s177 + $0xcc] sm:$0xf]
        %v258 = vld [vmem:[%s177 + $0xd0] sm:$0xf]
        %v259 = vld [vmem:[%s177 + $0xd4] sm:$0xf]
        %v260 = vld [vmem:[%s177 + $0xd8] sm:$0xf]
        %v261 = vld [vmem:[%s177 + $0xdc] sm:$0xf]
        %v262 = vld [vmem:[%s177 + $0xe0] sm:$0xf]
        %v263 = vld [vmem:[%s177 + $0xe4] sm:$0xf]
        %v264 = vld [vmem:[%s177 + $0xe8] sm:$0xf]
        %v265 = vld [vmem:[%s177 + $0xec] sm:$0xf]
        %v266 = vld [vmem:[%s177 + $0xf0] sm:$0xf]
        %v267 = vld [vmem:[%s177 + $0xf4] sm:$0xf]
        %v268 = vld [vmem:[%s177 + $0xf8] sm:$0xf]
        %v269 = vld [vmem:[%s177 + $0xfc] sm:$0xf]
        %v270 = vld [vmem:[%s177 + $0x100] sm:$0xf]
        %v271 = vld [vmem:[%s177 + $0x104] sm:$0xf]
        %v272 = vld [vmem:[%s177 + $0x108] sm:$0xf]
        %v273 = vld [vmem:[%s177 + $0x10c] sm:$0xf]
        %v274 = vld [vmem:[%s177 + $0x110] sm:$0xf]
        %v275 = vld [vmem:[%s177 + $0x114] sm:$0xf]
        %v276 = vld [vmem:[%s177 + $0x118] sm:$0xf]
        %v277 = vld [vmem:[%s177 + $0x11c] sm:$0xf]
        %v278 = vld [vmem:[%s177 + $0x120] sm:$0xf]
        %v279 = vld [vmem:[%s177 + $0x124] sm:$0xf]
        %v280 = vld [vmem:[%s177 + $0x128] sm:$0xf]
        %v281 = vld [vmem:[%s177 + $0x12c] sm:$0xf]
        %v282 = vld [vmem:[%s177 + $0x130] sm:$0xf]
        %v283 = vld [vmem:[%s177 + $0x134] sm:$0xf]
        %v284 = vld [vmem:[%s177 + $0x138] sm:$0xf]
        %v285 = vld [vmem:[%s177 + $0x13c] sm:$0xf]
        %v286 = vld [vmem:[%s177 + $0x140] sm:$0xf]
        %v287 = vld [vmem:[%s177 + $0x144] sm:$0xf]
        %v288 = vld [vmem:[%s177 + $0x148] sm:$0xf]
        %v289 = vld [vmem:[%s177 + $0x14c] sm:$0xf]
        %v290 = vld [vmem:[%s177 + $0x150] sm:$0xf]
        %v291 = vld [vmem:[%s177 + $0x154] sm:$0xf]
        %v292 = vld [vmem:[%s177 + $0x158] sm:$0xf]
        %v293 = vld [vmem:[%s177 + $0x15c] sm:$0xf]
        %v294 = vld [vmem:[%s177 + $0x160] sm:$0xf]
        %v295 = vld [vmem:[%s177 + $0x164] sm:$0xf]
        %v296 = vld [vmem:[%s177 + $0x168] sm:$0xf]
        %v297 = vld [vmem:[%s177 + $0x16c] sm:$0xf]
        %v298 = vld [vmem:[%s177 + $0x170] sm:$0xf]
        %v299 = vld [vmem:[%s177 + $0x174] sm:$0xf]
        %v300 = vld [vmem:[%s177 + $0x178] sm:$0xf]
        %v301 = vld [vmem:[%s177 + $0x17c] sm:$0xf]
        %v302 = vld [vmem:[%s177 + $0x180] sm:$0xf]
        %v303 = vld [vmem:[%s177 + $0x184] sm:$0xf]
        %v304 = vld [vmem:[%s177 + $0x188] sm:$0xf]
        %v305 = vld [vmem:[%s177 + $0x18c] sm:$0xf]
        %v306 = vld [vmem:[%s177 + $0x190] sm:$0xf]
        %v307 = vld [vmem:[%s177 + $0x194] sm:$0xf]
        %v308 = vld [vmem:[%s177 + $0x198] sm:$0xf]
        %v309 = vld [vmem:[%s177 + $0x19c] sm:$0xf]
        %v310 = vld [vmem:[%s177 + $0x1a0] sm:$0xf]
        %v311 = vld [vmem:[%s177 + $0x1a4] sm:$0xf]
        %v312 = vld [vmem:[%s177 + $0x1a8] sm:$0xf]
        %v313 = vld [vmem:[%s177 + $0x1ac] sm:$0xf]
        %v314 = vld [vmem:[%s177 + $0x1b0] sm:$0xf]
        %v315 = vld [vmem:[%s177 + $0x1b4] sm:$0xf]
        %v316 = vld [vmem:[%s177 + $0x1b8] sm:$0xf]
        %v317 = vld [vmem:[%s177 + $0x1bc] sm:$0xf]
        %v318 = vld [vmem:[%s177 + $0x1c0] sm:$0xf]
        %v319 = vld [vmem:[%s177 + $0x1c4] sm:$0xf]
        %v320 = vld [vmem:[%s177 + $0x1c8] sm:$0xf]
        %v321 = vld [vmem:[%s177 + $0x1cc] sm:$0xf]
        %v322 = vld [vmem:[%s177 + $0x1d0] sm:$0xf]
        %v323 = vld [vmem:[%s177 + $0x1d4] sm:$0xf]
        %v324 = vld [vmem:[%s177 + $0x1d8] sm:$0xf]
        %v325 = vld [vmem:[%s177 + $0x1dc] sm:$0xf]
        %v326 = vld [vmem:[%s177 + $0x1e0] sm:$0xf]
        %v327 = vld [vmem:[%s177 + $0x1e4] sm:$0xf]
        %v328 = vld [vmem:[%s177 + $0x1e8] sm:$0xf]
        %v329 = vld [vmem:[%s177 + $0x1ec] sm:$0xf]
        %v330 = vld [vmem:[%s177 + $0x1f0] sm:$0xf]
        %v331 = vld [vmem:[%s177 + $0x1f4] sm:$0xf]
        %v332 = vld [vmem:[%s177 + $0x1f8] sm:$0xf]
        %v333 = vld [vmem:[%s177 + $0x1fc] sm:$0xf]
        %v334 = vld [vmem:[%s177 + $0x200] sm:$0xf]
        %v335 = vld [vmem:[%s177 + $0x204] sm:$0xf]
        %v336 = vld [vmem:[%s177 + $0x208] sm:$0xf]
        %v337 = vld [vmem:[%s177 + $0x20c] sm:$0xf]
        %v338 = vld [vmem:[%s177 + $0x210] sm:$0xf]
        %v339 = vld [vmem:[%s177 + $0x214] sm:$0xf]
        %v340 = vld [vmem:[%s177 + $0x218] sm:$0xf]
        %v341 = vld [vmem:[%s177 + $0x21c] sm:$0xf]
        %v342 = vld [vmem:[%s177 + $0x220] sm:$0xf]
        %v343 = vld [vmem:[%s177 + $0x224] sm:$0xf]
        %v344 = vld [vmem:[%s177 + $0x228] sm:$0xf]
        %v345 = vld [vmem:[%s177 + $0x22c] sm:$0xf]
        %v346 = vld [vmem:[%s177 + $0x230] sm:$0xf]
        %v347 = vld [vmem:[%s177 + $0x234] sm:$0xf]
        %v348 = vld [vmem:[%s177 + $0x238] sm:$0xf]
        %v349 = vld [vmem:[%s177 + $0x23c] sm:$0xf]
        %v350 = vld [vmem:[%s177 + $0x240] sm:$0xf]
        %v351 = vld [vmem:[%s177 + $0x244] sm:$0xf]
        %v352 = vld [vmem:[%s177 + $0x248] sm:$0xf]
        %v353 = vld [vmem:[%s177 + $0x24c] sm:$0xf]
        %v354 = vld [vmem:[%s177 + $0x250] sm:$0xf]
        %v355 = vld [vmem:[%s177 + $0x254] sm:$0xf]
        %v356 = vld [vmem:[%s177 + $0x258] sm:$0xf]
        %v357 = vld [vmem:[%s177 + $0x25c] sm:$0xf]
        %v358 = vld [vmem:[%s177 + $0x260] sm:$0xf]
        %v359 = vld [vmem:[%s177 + $0x264] sm:$0xf]
        %v360 = vld [vmem:[%s177 + $0x268] sm:$0xf]
        %v361 = vld [vmem:[%s177 + $0x26c] sm:$0xf]
        %v362 = vld [vmem:[%s177 + $0x270] sm:$0xf]
        %v363 = vld [vmem:[%s177 + $0x274] sm:$0xf]
        %v364 = vld [vmem:[%s177 + $0x278] sm:$0xf]
        %v365 = vld [vmem:[%s177 + $0x27c] sm:$0xf]
        %v366 = vld [vmem:[%s177 + $0x280] sm:$0xf]
        %v367 = vld [vmem:[%s177 + $0x284] sm:$0xf]
        %v368 = vld [vmem:[%s177 + $0x288] sm:$0xf]
        %v369 = vld [vmem:[%s177 + $0x28c] sm:$0xf]
        %v370 = vld [vmem:[%s177 + $0x290] sm:$0xf]
        %v371 = vld [vmem:[%s177 + $0x294] sm:$0xf]
        %v372 = vld [vmem:[%s177 + $0x298] sm:$0xf]
        %v373 = vld [vmem:[%s177 + $0x29c] sm:$0xf]
        %v374 = vld [vmem:[%s177 + $0x2a0] sm:$0xf]
        %v375 = vld [vmem:[%s177 + $0x2a4] sm:$0xf]
        %v376 = vld [vmem:[%s177 + $0x2a8] sm:$0xf]
        %v377 = vld [vmem:[%s177 + $0x2ac] sm:$0xf]
        %v378 = vld [vmem:[%s177 + $0x2b0] sm:$0xf]
        %v379 = vld [vmem:[%s177 + $0x2b4] sm:$0xf]
        %v380 = vld [vmem:[%s177 + $0x2b8] sm:$0xf]
        %v381 = vld [vmem:[%s177 + $0x2bc] sm:$0xf]
        %v382 = vld [vmem:[%s177 + $0x2c0] sm:$0xf]
        %v383 = vld [vmem:[%s177 + $0x2c4] sm:$0xf]
        %v384 = vld [vmem:[%s177 + $0x2c8] sm:$0xf]
        %v385 = vld [vmem:[%s177 + $0x2cc] sm:$0xf]
        %v386 = vld [vmem:[%s177 + $0x2d0] sm:$0xf]
        %v387 = vld [vmem:[%s177 + $0x2d4] sm:$0xf]
        %v388 = vld [vmem:[%s177 + $0x2d8] sm:$0xf]
        %v389 = vld [vmem:[%s177 + $0x2dc] sm:$0xf]
        %v390 = vld [vmem:[%s177 + $0x2e0] sm:$0xf]
        %v391 = vld [vmem:[%s177 + $0x2e4] sm:$0xf]
        %v392 = vld [vmem:[%s177 + $0x2e8] sm:$0xf]
        %v393 = vld [vmem:[%s177 + $0x2ec] sm:$0xf]
        %v394 = vld [vmem:[%s177 + $0x2f0] sm:$0xf]
        %v395 = vld [vmem:[%s177 + $0x2f4] sm:$0xf]
        %v396 = vld [vmem:[%s177 + $0x2f8] sm:$0xf]
        %v397 = vld [vmem:[%s177 + $0x2fc] sm:$0xf]
        %v398 = vld [vmem:[%s177 + $0x300] sm:$0xf]
        %v399 = vld [vmem:[%s177 + $0x304] sm:$0xf]
        %v400 = vld [vmem:[%s177 + $0x308] sm:$0xf]
        %v401 = vld [vmem:[%s177 + $0x30c] sm:$0xf]
        %v402 = vld [vmem:[%s177 + $0x310] sm:$0xf]
        %v403 = vld [vmem:[%s177 + $0x314] sm:$0xf]
        %v404 = vld [vmem:[%s177 + $0x318] sm:$0xf]
        %v405 = vld [vmem:[%s177 + $0x31c] sm:$0xf]
        %v406 = vld [vmem:[%s177 + $0x320] sm:$0xf]
        %v407 = vld [vmem:[%s177 + $0x324] sm:$0xf]
        %v408 = vld [vmem:[%s177 + $0x328] sm:$0xf]
        %v409 = vld [vmem:[%s177 + $0x32c] sm:$0xf]
        %v410 = vld [vmem:[%s177 + $0x330] sm:$0xf]
        %v411 = vld [vmem:[%s177 + $0x334] sm:$0xf]
        %v412 = vld [vmem:[%s177 + $0x338] sm:$0xf]
        %v413 = vld [vmem:[%s177 + $0x33c] sm:$0xf]
        %v414 = vld [vmem:[%s177 + $0x340] sm:$0xf]
        %v415 = vld [vmem:[%s177 + $0x344] sm:$0xf]
        %v416 = vld [vmem:[%s177 + $0x348] sm:$0xf]
        %v417 = vld [vmem:[%s177 + $0x34c] sm:$0xf]
        %v418 = vld [vmem:[%s177 + $0x350] sm:$0xf]
        %v419 = vld [vmem:[%s177 + $0x354] sm:$0xf]
        %v420 = vld [vmem:[%s177 + $0x358] sm:$0xf]
        %v421 = vld [vmem:[%s177 + $0x35c] sm:$0xf]
        %v422 = vld [vmem:[%s177 + $0x360] sm:$0xf]
        %v423 = vld [vmem:[%s177 + $0x364] sm:$0xf]
        %v424 = vld [vmem:[%s177 + $0x368] sm:$0xf]
        %v425 = vld [vmem:[%s177 + $0x36c] sm:$0xf]
        %v426 = vld [vmem:[%s177 + $0x370] sm:$0xf]
        %v427 = vld [vmem:[%s177 + $0x374] sm:$0xf]
        %v428 = vld [vmem:[%s177 + $0x378] sm:$0xf]
        %v429 = vld [vmem:[%s177 + $0x37c] sm:$0xf]
        %v430 = vld [vmem:[%s177 + $0x380] sm:$0xf]
        %v431 = vld [vmem:[%s177 + $0x384] sm:$0xf]
        %v432 = vld [vmem:[%s177 + $0x388] sm:$0xf]
        %v433 = vld [vmem:[%s177 + $0x38c] sm:$0xf]
        %v434 = vld [vmem:[%s177 + $0x390] sm:$0xf]
        %v435 = vld [vmem:[%s177 + $0x394] sm:$0xf]
        %v436 = vld [vmem:[%s177 + $0x398] sm:$0xf]
        %v437 = vld [vmem:[%s177 + $0x39c] sm:$0xf]
        %v438 = vld [vmem:[%s177 + $0x3a0] sm:$0xf]
        %v439 = vld [vmem:[%s177 + $0x3a4] sm:$0xf]
        %v440 = vld [vmem:[%s177 + $0x3a8] sm:$0xf]
        %v441 = vld [vmem:[%s177 + $0x3ac] sm:$0xf]
        %v442 = vld [vmem:[%s177 + $0x3b0] sm:$0xf]
        %v443 = vld [vmem:[%s177 + $0x3b4] sm:$0xf]
        %v444 = vld [vmem:[%s177 + $0x3b8] sm:$0xf]
        %v445 = vld [vmem:[%s177 + $0x3bc] sm:$0xf]
        %v446 = vld [vmem:[%s177 + $0x3c0] sm:$0xf]
        %v447 = vld [vmem:[%s177 + $0x3c4] sm:$0xf]
        %v448 = vld [vmem:[%s177 + $0x3c8] sm:$0xf]
        %v449 = vld [vmem:[%s177 + $0x3cc] sm:$0xf]
        %v450 = vld [vmem:[%s177 + $0x3d0] sm:$0xf]
        %v451 = vld [vmem:[%s177 + $0x3d4] sm:$0xf]
        %v452 = vld [vmem:[%s177 + $0x3d8] sm:$0xf]
        %v453 = vld [vmem:[%s177 + $0x3dc] sm:$0xf]
        %v454 = vld [vmem:[%s177 + $0x3e0] sm:$0xf]
        %v455 = vld [vmem:[%s177 + $0x3e4] sm:$0xf]
        %v456 = vld [vmem:[%s177 + $0x3e8] sm:$0xf]
        %v457 = vld [vmem:[%s177 + $0x3ec] sm:$0xf]
        %v458 = vld [vmem:[%s177 + $0x3f0] sm:$0xf]
        %v459 = vld [vmem:[%s177 + $0x3f4] sm:$0xf]
        %v460 = vld [vmem:[%s177 + $0x3f8] sm:$0xf]
        %v461 = vld [vmem:[%s177 + $0x3fc] sm:$0xf]
        %v462 = vld [vmem:[#allocation5] sm:$0xf]
        %v463 = vld [vmem:[#allocation5 + $0x4] sm:$0xf]
        %v464 = vld [vmem:[#allocation5 + $0x8] sm:$0xf]
        %v465 = vld [vmem:[#allocation5 + $0xc] sm:$0xf]
        %v466 = vld [vmem:[#allocation5 + $0x10] sm:$0xf]
        %v467 = vld [vmem:[#allocation5 + $0x14] sm:$0xf]
        %v468 = vld [vmem:[#allocation5 + $0x18] sm:$0xf]
        %v469 = vld [vmem:[#allocation5 + $0x1c] sm:$0xf]
        %v470 = vld [vmem:[#allocation5 + $0x20] sm:$0xf]
        %v471 = vld [vmem:[#allocation5 + $0x24] sm:$0xf]
        %v472 = vld [vmem:[#allocation5 + $0x28] sm:$0xf]
        %v473 = vld [vmem:[#allocation5 + $0x2c] sm:$0xf]
        %v474 = vld [vmem:[#allocation5 + $0x30] sm:$0xf]
        %v475 = vld [vmem:[#allocation5 + $0x34] sm:$0xf]
        %v476 = vld [vmem:[#allocation5 + $0x38] sm:$0xf]
        %v477 = vld [vmem:[#allocation5 + $0x3c] sm:$0xf]
        %v478 = vld [vmem:[%s2] sm:$0x1]
        %v480 = vlaneseq
        %v481 = vshrl.u32 %v480, 7
        %v482 = vsub.s32 0, %v481
        %v483 = vrot.slane %v478, %v482
        %v741 = vunpack.c.l.b16 %v206
        %v742 = vunpack.c.l.b16 %v207
        %v743 = vunpack.c.l.b16 %v208
        %v744 = vunpack.c.l.b16 %v209
        %v745 = vunpack.c.l.b16 %v210
        %v746 = vunpack.c.l.b16 %v211
        %v747 = vunpack.c.l.b16 %v212
        %v748 = vunpack.c.l.b16 %v213
        %v749 = vunpack.c.l.b16 %v214
        %v750 = vunpack.c.l.b16 %v215
        %v751 = vunpack.c.l.b16 %v216
        %v752 = vunpack.c.l.b16 %v217
        %v753 = vunpack.c.l.b16 %v218
        %v754 = vunpack.c.l.b16 %v219
        %v755 = vunpack.c.l.b16 %v220
        %v756 = vunpack.c.l.b16 %v221
        %v757 = vunpack.c.l.b16 %v222
        %v758 = vunpack.c.l.b16 %v223
        %v759 = vunpack.c.l.b16 %v224
        %v760 = vunpack.c.l.b16 %v225
        %v761 = vunpack.c.l.b16 %v226
        %v762 = vunpack.c.l.b16 %v227
        %v763 = vunpack.c.l.b16 %v228
        %v764 = vunpack.c.l.b16 %v229
        %v765 = vunpack.c.l.b16 %v230
        %v766 = vunpack.c.l.b16 %v231
        %v767 = vunpack.c.l.b16 %v232
        %v768 = vunpack.c.l.b16 %v233
        %v769 = vunpack.c.l.b16 %v234
        %v770 = vunpack.c.l.b16 %v235
        %v771 = vunpack.c.l.b16 %v236
        %v772 = vunpack.c.l.b16 %v237
        %v773 = vunpack.c.l.b16 %v238
        %v774 = vunpack.c.l.b16 %v239
        %v775 = vunpack.c.l.b16 %v240
        %v776 = vunpack.c.l.b16 %v241
        %v777 = vunpack.c.l.b16 %v242
        %v778 = vunpack.c.l.b16 %v243
        %v779 = vunpack.c.l.b16 %v244
        %v780 = vunpack.c.l.b16 %v245
        %v781 = vunpack.c.l.b16 %v246
        %v782 = vunpack.c.l.b16 %v247
        %v783 = vunpack.c.l.b16 %v248
        %v784 = vunpack.c.l.b16 %v249
        %v785 = vunpack.c.l.b16 %v250
        %v786 = vunpack.c.l.b16 %v251
        %v787 = vunpack.c.l.b16 %v252
        %v788 = vunpack.c.l.b16 %v253
        %v789 = vunpack.c.l.b16 %v254
        %v790 = vunpack.c.l.b16 %v255
        %v791 = vunpack.c.l.b16 %v256
        %v792 = vunpack.c.l.b16 %v257
        %v793 = vunpack.c.l.b16 %v258
        %v794 = vunpack.c.l.b16 %v259
        %v795 = vunpack.c.l.b16 %v260
        %v796 = vunpack.c.l.b16 %v261
        %v797 = vunpack.c.l.b16 %v262
        %v798 = vunpack.c.l.b16 %v263
        %v799 = vunpack.c.l.b16 %v264
        %v800 = vunpack.c.l.b16 %v265
        %v801 = vunpack.c.l.b16 %v266
        %v802 = vunpack.c.l.b16 %v267
        %v803 = vunpack.c.l.b16 %v268
        %v804 = vunpack.c.l.b16 %v269
        %v805 = vunpack.c.l.b16 %v270
        %v806 = vunpack.c.l.b16 %v271
        %v807 = vunpack.c.l.b16 %v272
        %v808 = vunpack.c.l.b16 %v273
        %v809 = vunpack.c.l.b16 %v274
        %v810 = vunpack.c.l.b16 %v275
        %v811 = vunpack.c.l.b16 %v276
        %v812 = vunpack.c.l.b16 %v277
        %v813 = vunpack.c.l.b16 %v278
        %v814 = vunpack.c.l.b16 %v279
        %v815 = vunpack.c.l.b16 %v280
        %v816 = vunpack.c.l.b16 %v281
        %v817 = vunpack.c.l.b16 %v282
        %v818 = vunpack.c.l.b16 %v283
        %v819 = vunpack.c.l.b16 %v284
        %v820 = vunpack.c.l.b16 %v285
        %v821 = vunpack.c.l.b16 %v286
        %v822 = vunpack.c.l.b16 %v287
        %v823 = vunpack.c.l.b16 %v288
        %v824 = vunpack.c.l.b16 %v289
        %v825 = vunpack.c.l.b16 %v290
        %v826 = vunpack.c.l.b16 %v291
        %v827 = vunpack.c.l.b16 %v292
        %v828 = vunpack.c.l.b16 %v293
        %v829 = vunpack.c.l.b16 %v294
        %v830 = vunpack.c.l.b16 %v295
        %v831 = vunpack.c.l.b16 %v296
        %v832 = vunpack.c.l.b16 %v297
        %v833 = vunpack.c.l.b16 %v298
        %v834 = vunpack.c.l.b16 %v299
        %v835 = vunpack.c.l.b16 %v300
        %v836 = vunpack.c.l.b16 %v301
        %v837 = vunpack.c.l.b16 %v302
        %v838 = vunpack.c.l.b16 %v303
        %v839 = vunpack.c.l.b16 %v304
        %v840 = vunpack.c.l.b16 %v305
        %v841 = vunpack.c.l.b16 %v306
        %v842 = vunpack.c.l.b16 %v307
        %v843 = vunpack.c.l.b16 %v308
        %v844 = vunpack.c.l.b16 %v309
        %v845 = vunpack.c.l.b16 %v310
        %v846 = vunpack.c.l.b16 %v311
        %v847 = vunpack.c.l.b16 %v312
        %v848 = vunpack.c.l.b16 %v313
        %v849 = vunpack.c.l.b16 %v314
        %v850 = vunpack.c.l.b16 %v315
        %v851 = vunpack.c.l.b16 %v316
        %v852 = vunpack.c.l.b16 %v317
        %v853 = vunpack.c.l.b16 %v318
        %v854 = vunpack.c.l.b16 %v319
        %v855 = vunpack.c.l.b16 %v320
        %v856 = vunpack.c.l.b16 %v321
        %v857 = vunpack.c.l.b16 %v322
        %v858 = vunpack.c.l.b16 %v323
        %v859 = vunpack.c.l.b16 %v324
        %v860 = vunpack.c.l.b16 %v325
        %v861 = vunpack.c.l.b16 %v326
        %v862 = vunpack.c.l.b16 %v327
        %v863 = vunpack.c.l.b16 %v328
        %v864 = vunpack.c.l.b16 %v329
        %v865 = vunpack.c.l.b16 %v330
        %v866 = vunpack.c.l.b16 %v331
        %v867 = vunpack.c.l.b16 %v332
        %v868 = vunpack.c.l.b16 %v333
        %v869 = vunpack.c.l.b16 %v334
        %v870 = vunpack.c.l.b16 %v335
        %v871 = vunpack.c.l.b16 %v336
        %v872 = vunpack.c.l.b16 %v337
        %v873 = vunpack.c.l.b16 %v338
        %v874 = vunpack.c.l.b16 %v339
        %v875 = vunpack.c.l.b16 %v340
        %v876 = vunpack.c.l.b16 %v341
        %v877 = vunpack.c.l.b16 %v342
        %v878 = vunpack.c.l.b16 %v343
        %v879 = vunpack.c.l.b16 %v344
        %v880 = vunpack.c.l.b16 %v345
        %v881 = vunpack.c.l.b16 %v346
        %v882 = vunpack.c.l.b16 %v347
        %v883 = vunpack.c.l.b16 %v348
        %v884 = vunpack.c.l.b16 %v349
        %v885 = vunpack.c.l.b16 %v350
        %v886 = vunpack.c.l.b16 %v351
        %v887 = vunpack.c.l.b16 %v352
        %v888 = vunpack.c.l.b16 %v353
        %v889 = vunpack.c.l.b16 %v354
        %v890 = vunpack.c.l.b16 %v355
        %v891 = vunpack.c.l.b16 %v356
        %v892 = vunpack.c.l.b16 %v357
        %v893 = vunpack.c.l.b16 %v358
        %v894 = vunpack.c.l.b16 %v359
        %v895 = vunpack.c.l.b16 %v360
        %v896 = vunpack.c.l.b16 %v361
        %v897 = vunpack.c.l.b16 %v362
        %v898 = vunpack.c.l.b16 %v363
        %v899 = vunpack.c.l.b16 %v364
        %v900 = vunpack.c.l.b16 %v365
        %v901 = vunpack.c.l.b16 %v366
        %v902 = vunpack.c.l.b16 %v367
        %v903 = vunpack.c.l.b16 %v368
        %v904 = vunpack.c.l.b16 %v369
        %v905 = vunpack.c.l.b16 %v370
        %v906 = vunpack.c.l.b16 %v371
        %v907 = vunpack.c.l.b16 %v372
        %v908 = vunpack.c.l.b16 %v373
        %v909 = vunpack.c.l.b16 %v374
        %v910 = vunpack.c.l.b16 %v375
        %v911 = vunpack.c.l.b16 %v376
        %v912 = vunpack.c.l.b16 %v377
        %v913 = vunpack.c.l.b16 %v378
        %v914 = vunpack.c.l.b16 %v379
        %v915 = vunpack.c.l.b16 %v380
        %v916 = vunpack.c.l.b16 %v381
        %v917 = vunpack.c.l.b16 %v382
        %v918 = vunpack.c.l.b16 %v383
        %v919 = vunpack.c.l.b16 %v384
        %v920 = vunpack.c.l.b16 %v385
        %v921 = vunpack.c.l.b16 %v386
        %v922 = vunpack.c.l.b16 %v387
        %v923 = vunpack.c.l.b16 %v388
        %v924 = vunpack.c.l.b16 %v389
        %v925 = vunpack.c.l.b16 %v390
        %v926 = vunpack.c.l.b16 %v391
        %v927 = vunpack.c.l.b16 %v392
        %v928 = vunpack.c.l.b16 %v393
        %v929 = vunpack.c.l.b16 %v394
        %v930 = vunpack.c.l.b16 %v395
        %v931 = vunpack.c.l.b16 %v396
        %v932 = vunpack.c.l.b16 %v397
        %v933 = vunpack.c.l.b16 %v398
        %v934 = vunpack.c.l.b16 %v399
        %v935 = vunpack.c.l.b16 %v400
        %v936 = vunpack.c.l.b16 %v401
        %v937 = vunpack.c.l.b16 %v402
        %v938 = vunpack.c.l.b16 %v403
        %v939 = vunpack.c.l.b16 %v404
        %v940 = vunpack.c.l.b16 %v405
        %v941 = vunpack.c.l.b16 %v406
        %v942 = vunpack.c.l.b16 %v407
        %v943 = vunpack.c.l.b16 %v408
        %v944 = vunpack.c.l.b16 %v409
        %v945 = vunpack.c.l.b16 %v410
        %v946 = vunpack.c.l.b16 %v411
        %v947 = vunpack.c.l.b16 %v412
        %v948 = vunpack.c.l.b16 %v413
        %v949 = vunpack.c.l.b16 %v414
        %v950 = vunpack.c.l.b16 %v415
        %v951 = vunpack.c.l.b16 %v416
        %v952 = vunpack.c.l.b16 %v417
        %v953 = vunpack.c.l.b16 %v418
        %v954 = vunpack.c.l.b16 %v419
        %v955 = vunpack.c.l.b16 %v420
        %v956 = vunpack.c.l.b16 %v421
        %v957 = vunpack.c.l.b16 %v422
        %v958 = vunpack.c.l.b16 %v423
        %v959 = vunpack.c.l.b16 %v424
        %v960 = vunpack.c.l.b16 %v425
        %v961 = vunpack.c.l.b16 %v426
        %v962 = vunpack.c.l.b16 %v427
        %v963 = vunpack.c.l.b16 %v428
        %v964 = vunpack.c.l.b16 %v429
        %v965 = vunpack.c.l.b16 %v430
        %v966 = vunpack.c.l.b16 %v431
        %v967 = vunpack.c.l.b16 %v432
        %v968 = vunpack.c.l.b16 %v433
        %v969 = vunpack.c.l.b16 %v434
        %v970 = vunpack.c.l.b16 %v435
        %v971 = vunpack.c.l.b16 %v436
        %v972 = vunpack.c.l.b16 %v437
        %v973 = vunpack.c.l.b16 %v438
        %v974 = vunpack.c.l.b16 %v439
        %v975 = vunpack.c.l.b16 %v440
        %v976 = vunpack.c.l.b16 %v441
        %v977 = vunpack.c.l.b16 %v442
        %v978 = vunpack.c.l.b16 %v443
        %v979 = vunpack.c.l.b16 %v444
        %v980 = vunpack.c.l.b16 %v445
        %v981 = vunpack.c.l.b16 %v446
        %v982 = vunpack.c.l.b16 %v447
        %v983 = vunpack.c.l.b16 %v448
        %v984 = vunpack.c.l.b16 %v449
        %v985 = vunpack.c.l.b16 %v450
        %v986 = vunpack.c.l.b16 %v451
        %v987 = vunpack.c.l.b16 %v452
        %v988 = vunpack.c.l.b16 %v453
        %v989 = vunpack.c.l.b16 %v454
        %v990 = vunpack.c.l.b16 %v455
        %v991 = vunpack.c.l.b16 %v456
        %v992 = vunpack.c.l.b16 %v457
        %v993 = vunpack.c.l.b16 %v458
        %v994 = vunpack.c.l.b16 %v459
        %v995 = vunpack.c.l.b16 %v460
        %v996 = vunpack.c.l.b16 %v461
        %v997 = vpack.c.b16 %v742, %v741
        %v998 = vpack.c.b16 %v744, %v743
        %v999 = vpack.c.b16 %v746, %v745
        %v1000 = vpack.c.b16 %v748, %v747
        %v1001 = vpack.c.b16 %v750, %v749
        %v1002 = vpack.c.b16 %v752, %v751
        %v1003 = vpack.c.b16 %v754, %v753
        %v1004 = vpack.c.b16 %v756, %v755
        %v1005 = vpack.c.b16 %v758, %v757
        %v1006 = vpack.c.b16 %v760, %v759
        %v1007 = vpack.c.b16 %v762, %v761
        %v1008 = vpack.c.b16 %v764, %v763
        %v1009 = vpack.c.b16 %v766, %v765
        %v1010 = vpack.c.b16 %v768, %v767
        %v1011 = vpack.c.b16 %v770, %v769
        %v1012 = vpack.c.b16 %v772, %v771
        %v1013 = vpack.c.b16 %v774, %v773
        %v1014 = vpack.c.b16 %v776, %v775
        %v1015 = vpack.c.b16 %v778, %v777
        %v1016 = vpack.c.b16 %v780, %v779
        %v1017 = vpack.c.b16 %v782, %v781
        %v1018 = vpack.c.b16 %v784, %v783
        %v1019 = vpack.c.b16 %v786, %v785
        %v1020 = vpack.c.b16 %v788, %v787
        %v1021 = vpack.c.b16 %v790, %v789
        %v1022 = vpack.c.b16 %v792, %v791
        %v1023 = vpack.c.b16 %v794, %v793
        %v1024 = vpack.c.b16 %v796, %v795
        %v1025 = vpack.c.b16 %v798, %v797
        %v1026 = vpack.c.b16 %v800, %v799
        %v1027 = vpack.c.b16 %v802, %v801
        %v1028 = vpack.c.b16 %v804, %v803
        %v1029 = vpack.c.b16 %v806, %v805
        %v1030 = vpack.c.b16 %v808, %v807
        %v1031 = vpack.c.b16 %v810, %v809
        %v1032 = vpack.c.b16 %v812, %v811
        %v1033 = vpack.c.b16 %v814, %v813
        %v1034 = vpack.c.b16 %v816, %v815
        %v1035 = vpack.c.b16 %v818, %v817
        %v1036 = vpack.c.b16 %v820, %v819
        %v1037 = vpack.c.b16 %v822, %v821
        %v1038 = vpack.c.b16 %v824, %v823
        %v1039 = vpack.c.b16 %v826, %v825
        %v1040 = vpack.c.b16 %v828, %v827
        %v1041 = vpack.c.b16 %v830, %v829
        %v1042 = vpack.c.b16 %v832, %v831
        %v1043 = vpack.c.b16 %v834, %v833
        %v1044 = vpack.c.b16 %v836, %v835
        %v1045 = vpack.c.b16 %v838, %v837
        %v1046 = vpack.c.b16 %v840, %v839
        %v1047 = vpack.c.b16 %v842, %v841
        %v1048 = vpack.c.b16 %v844, %v843
        %v1049 = vpack.c.b16 %v846, %v845
        %v1050 = vpack.c.b16 %v848, %v847
        %v1051 = vpack.c.b16 %v850, %v849
        %v1052 = vpack.c.b16 %v852, %v851
        %v1053 = vpack.c.b16 %v854, %v853
        %v1054 = vpack.c.b16 %v856, %v855
        %v1055 = vpack.c.b16 %v858, %v857
        %v1056 = vpack.c.b16 %v860, %v859
        %v1057 = vpack.c.b16 %v862, %v861
        %v1058 = vpack.c.b16 %v864, %v863
        %v1059 = vpack.c.b16 %v866, %v865
        %v1060 = vpack.c.b16 %v868, %v867
        %v1061 = vpack.c.b16 %v870, %v869
        %v1062 = vpack.c.b16 %v872, %v871
        %v1063 = vpack.c.b16 %v874, %v873
        %v1064 = vpack.c.b16 %v876, %v875
        %v1065 = vpack.c.b16 %v878, %v877
        %v1066 = vpack.c.b16 %v880, %v879
        %v1067 = vpack.c.b16 %v882, %v881
        %v1068 = vpack.c.b16 %v884, %v883
        %v1069 = vpack.c.b16 %v886, %v885
        %v1070 = vpack.c.b16 %v888, %v887
        %v1071 = vpack.c.b16 %v890, %v889
        %v1072 = vpack.c.b16 %v892, %v891
        %v1073 = vpack.c.b16 %v894, %v893
        %v1074 = vpack.c.b16 %v896, %v895
        %v1075 = vpack.c.b16 %v898, %v897
        %v1076 = vpack.c.b16 %v900, %v899
        %v1077 = vpack.c.b16 %v902, %v901
        %v1078 = vpack.c.b16 %v904, %v903
        %v1079 = vpack.c.b16 %v906, %v905
        %v1080 = vpack.c.b16 %v908, %v907
        %v1081 = vpack.c.b16 %v910, %v909
        %v1082 = vpack.c.b16 %v912, %v911
        %v1083 = vpack.c.b16 %v914, %v913
        %v1084 = vpack.c.b16 %v916, %v915
        %v1085 = vpack.c.b16 %v918, %v917
        %v1086 = vpack.c.b16 %v920, %v919
        %v1087 = vpack.c.b16 %v922, %v921
        %v1088 = vpack.c.b16 %v924, %v923
        %v1089 = vpack.c.b16 %v926, %v925
        %v1090 = vpack.c.b16 %v928, %v927
        %v1091 = vpack.c.b16 %v930, %v929
        %v1092 = vpack.c.b16 %v932, %v931
        %v1093 = vpack.c.b16 %v934, %v933
        %v1094 = vpack.c.b16 %v936, %v935
        %v1095 = vpack.c.b16 %v938, %v937
        %v1096 = vpack.c.b16 %v940, %v939
        %v1097 = vpack.c.b16 %v942, %v941
        %v1098 = vpack.c.b16 %v944, %v943
        %v1099 = vpack.c.b16 %v946, %v945
        %v1100 = vpack.c.b16 %v948, %v947
        %v1101 = vpack.c.b16 %v950, %v949
        %v1102 = vpack.c.b16 %v952, %v951
        %v1103 = vpack.c.b16 %v954, %v953
        %v1104 = vpack.c.b16 %v956, %v955
        %v1105 = vpack.c.b16 %v958, %v957
        %v1106 = vpack.c.b16 %v960, %v959
        %v1107 = vpack.c.b16 %v962, %v961
        %v1108 = vpack.c.b16 %v964, %v963
        %v1109 = vpack.c.b16 %v966, %v965
        %v1110 = vpack.c.b16 %v968, %v967
        %v1111 = vpack.c.b16 %v970, %v969
        %v1112 = vpack.c.b16 %v972, %v971
        %v1113 = vpack.c.b16 %v974, %v973
        %v1114 = vpack.c.b16 %v976, %v975
        %v1115 = vpack.c.b16 %v978, %v977
        %v1116 = vpack.c.b16 %v980, %v979
        %v1117 = vpack.c.b16 %v982, %v981
        %v1118 = vpack.c.b16 %v984, %v983
        %v1119 = vpack.c.b16 %v986, %v985
        %v1120 = vpack.c.b16 %v988, %v987
        %v1121 = vpack.c.b16 %v990, %v989
        %v1122 = vpack.c.b16 %v992, %v991
        %v1123 = vpack.c.b16 %v994, %v993
        %v1124 = vpack.c.b16 %v996, %v995
        %v1269 = vunpack.c.l.b16 %v462
        %v1270 = vunpack.c.l.b16 %v463
        %v1271 = vunpack.c.l.b16 %v464
        %v1272 = vunpack.c.l.b16 %v465
        %v1273 = vunpack.c.l.b16 %v466
        %v1274 = vunpack.c.l.b16 %v467
        %v1275 = vunpack.c.l.b16 %v468
        %v1276 = vunpack.c.l.b16 %v469
        %v1277 = vunpack.c.l.b16 %v470
        %v1278 = vunpack.c.l.b16 %v471
        %v1279 = vunpack.c.l.b16 %v472
        %v1280 = vunpack.c.l.b16 %v473
        %v1281 = vunpack.c.l.b16 %v474
        %v1282 = vunpack.c.l.b16 %v475
        %v1283 = vunpack.c.l.b16 %v476
        %v1284 = vunpack.c.l.b16 %v477
        %v1285 = vpack.c.b16 %v1270, %v1269
        %v1286 = vpack.c.b16 %v1272, %v1271
        %v1287 = vpack.c.b16 %v1274, %v1273
        %v1288 = vpack.c.b16 %v1276, %v1275
        %v1289 = vpack.c.b16 %v1278, %v1277
        %v1290 = vpack.c.b16 %v1280, %v1279
        %v1291 = vpack.c.b16 %v1282, %v1281
        %v1292 = vpack.c.b16 %v1284, %v1283
        %1301 = vmatprep.subr.bf16.mxu0 0
        %1302 = vmatpush1.bf16.msra.mxu0 %v1285
        %1303 = vmatprep.subr.bf16.mxu0 0
        %1304 = vmatpush1.bf16.msra.mxu0 %v1286
        %1305 = vmatprep.subr.bf16.mxu0 0
        %1306 = vmatpush1.bf16.msra.mxu0 %v1287
        %1307 = vmatprep.subr.bf16.mxu0 0
        %1308 = vmatpush1.bf16.msra.mxu0 %v1288
        %1309 = vmatprep.subr.bf16.mxu0 0
        %1310 = vmatpush1.bf16.msra.mxu0 %v1289
        %1311 = vmatprep.subr.bf16.mxu0 0
        %1312 = vmatpush1.bf16.msra.mxu0 %v1290
        %1313 = vmatprep.subr.bf16.mxu0 0
        %1314 = vmatpush1.bf16.msra.mxu0 %v1291
        %1315 = vmatprep.subr.bf16.mxu0 0
        %1316 = vmatpush1.bf16.msra.mxu0 %v1292
        %1317 = vmatprep.subr.bf16.mxu0 0
        %1318 = vmatpush1.bf16.msra.mxu0 0
        %1319 = vmatprep.subr.bf16.mxu0 0
        %1320 = vmatpush1.bf16.msra.mxu0 0
        %1321 = vmatprep.subr.bf16.mxu0 0
        %1322 = vmatpush1.bf16.msra.mxu0 0
        %1323 = vmatprep.subr.bf16.mxu0 0
        %1324 = vmatpush1.bf16.msra.mxu0 0
        %1325 = vmatprep.subr.bf16.mxu0 0
        %1326 = vmatpush1.bf16.msra.mxu0 0
        %1327 = vmatprep.subr.bf16.mxu0 0
        %1328 = vmatpush1.bf16.msra.mxu0 0
        %1329 = vmatprep.subr.bf16.mxu0 0
        %1330 = vmatpush1.bf16.msra.mxu0 0
        %1331 = vmatprep.subr.bf16.mxu0 0
        %1332 = vmatpush1.bf16.msra.mxu0 0
        %1333 = vmatprep.mubr.bf16.mxu0 0
        %1334 = vmatmul.mubr.bf16.gmra.mrb[0].mxu0 %v997
        %v1335 = vpop.f32.mrb[0].mxu0
        %v1336 = vadd.f32 %v483, %v1335
        %v1337 = vpop.f32.mrb[0].mxu0
        %v1338 = vpop.f32.mrb[0].mxu0
        %v1339 = vadd.f32 %v483, %v1338
        %v1340 = vpop.f32.mrb[0].mxu0
        %1341 = vmatprep.mubr.bf16.mxu0 0
        %1342 = vmatmul.mubr.bf16.gmra.mrb[0].mxu0 %v998
        %v1343 = vpop.f32.mrb[0].mxu0
        %v1344 = vadd.f32 %v483, %v1343
        %v1345 = vpop.f32.mrb[0].mxu0
        %v1346 = vpop.f32.mrb[0].mxu0
        %v1347 = vadd.f32 %v483, %v1346
        %v1348 = vpop.f32.mrb[0].mxu0
        %1349 = vmatprep.mubr.bf16.mxu0 0
        %1350 = vmatmul.mubr.bf16.gmra.mrb[0].mxu0 %v999
        %v1351 = vpop.f32.mrb[0].mxu0
        %v1352 = vadd.f32 %v483, %v1351
        %v1353 = vpop.f32.mrb[0].mxu0
        %v1354 = vpop.f32.mrb[0].mxu0
        %v1355 = vadd.f32 %v483, %v1354
        %v1356 = vpop.f32.mrb[0].mxu0
        %1357 = vmatprep.mubr.bf16.mxu0 0
        %1358 = vmatmul.mubr.bf16.gmra.mrb[0].mxu0 %v1000
        %v1359 = vpop.f32.mrb[0].mxu0
        %v1360 = vadd.f32 %v483, %v1359
        %v1361 = vpop.f32.mrb[0].mxu0
        %v1362 = vpop.f32.mrb[0].mxu0
        %v1363 = vadd.f32 %v483, %v1362
        %v1364 = vpop.f32.mrb[0].mxu0
        %1365 = vmatprep.mubr.bf16.mxu0 0
        %1366 = vmatmul.mubr.bf16.gmra.mrb[0].mxu0 %v1001
        %v1367 = vpop.f32.mrb[0].mxu0
        %v1368 = vadd.f32 %v483, %v1367
        %v1369 = vpop.f32.mrb[0].mxu0
        %v1370 = vpop.f32.mrb[0].mxu0
        %v1371 = vadd.f32 %v483, %v1370
        %v1372 = vpop.f32.mrb[0].mxu0
        %1373 = vmatprep.mubr.bf16.mxu0 0
        %1374 = vmatmul.mubr.bf16.gmra.mrb[0].mxu0 %v1002
        %v1375 = vpop.f32.mrb[0].mxu0
        %v1376 = vadd.f32 %v483, %v1375
        %v1377 = vpop.f32.mrb[0].mxu0
        %v1378 = vpop.f32.mrb[0].mxu0
        %v1379 = vadd.f32 %v483, %v1378
        %v1380 = vpop.f32.mrb[0].mxu0
        %1381 = vmatprep.mubr.bf16.mxu0 0
        %1382 = vmatmul.mubr.bf16.gmra.mrb[0].mxu0 %v1003
        %v1383 = vpop.f32.mrb[0].mxu0
        %v1384 = vadd.f32 %v483, %v1383
        %v1385 = vpop.f32.mrb[0].mxu0
        %v1386 = vpop.f32.mrb[0].mxu0
        %v1387 = vadd.f32 %v483, %v1386
        %v1388 = vpop.f32.mrb[0].mxu0
        %1389 = vmatprep.mubr.bf16.mxu0 0
        %1390 = vmatmul.mubr.bf16.gmra.mrb[0].mxu0 %v1004
        %v1391 = vpop.f32.mrb[0].mxu0
        %v1392 = vadd.f32 %v483, %v1391
        %v1393 = vpop.f32.mrb[0].mxu0
        %v1394 = vpop.f32.mrb[0].mxu0
        %v1395 = vadd.f32 %v483, %v1394
        %v1396 = vpop.f32.mrb[0].mxu0
        %1397 = vmatprep.mubr.bf16.mxu0 0
        %1398 = vmatmul.mubr.bf16.gmra.mrb[0].mxu0 %v1005
        %v1399 = vpop.f32.mrb[0].mxu0
        %v1400 = vadd.f32 %v483, %v1399
        %v1401 = vpop.f32.mrb[0].mxu0
        %v1402 = vpop.f32.mrb[0].mxu0
        %v1403 = vadd.f32 %v483, %v1402
        %v1404 = vpop.f32.mrb[0].mxu0
        %1405 = vmatprep.mubr.bf16.mxu0 0
        %1406 = vmatmul.mubr.bf16.gmra.mrb[0].mxu0 %v1006
        %v1407 = vpop.f32.mrb[0].mxu0
        %v1408 = vadd.f32 %v483, %v1407
        %v1409 = vpop.f32.mrb[0].mxu0
        %v1410 = vpop.f32.mrb[0].mxu0
        %v1411 = vadd.f32 %v483, %v1410
        %v1412 = vpop.f32.mrb[0].mxu0
        %1413 = vmatprep.mubr.bf16.mxu0 0
        %1414 = vmatmul.mubr.bf16.gmra.mrb[0].mxu0 %v1007
        %v1415 = vpop.f32.mrb[0].mxu0
        %v1416 = vadd.f32 %v483, %v1415
        %v1417 = vpop.f32.mrb[0].mxu0
        %v1418 = vpop.f32.mrb[0].mxu0
        %v1419 = vadd.f32 %v483, %v1418
        %v1420 = vpop.f32.mrb[0].mxu0
        %1421 = vmatprep.mubr.bf16.mxu0 0
        %1422 = vmatmul.mubr.bf16.gmra.mrb[0].mxu0 %v1008
        %v1423 = vpop.f32.mrb[0].mxu0
        %v1424 = vadd.f32 %v483, %v1423
        %v1425 = vpop.f32.mrb[0].mxu0
        %v1426 = vpop.f32.mrb[0].mxu0
        %v1427 = vadd.f32 %v483, %v1426
        %v1428 = vpop.f32.mrb[0].mxu0
        %1429 = vmatprep.mubr.bf16.mxu0 0
        %1430 = vmatmul.mubr.bf16.gmra.mrb[0].mxu0 %v1009
        %v1431 = vpop.f32.mrb[0].mxu0
        %v1432 = vadd.f32 %v483, %v1431
        %v1433 = vpop.f32.mrb[0].mxu0
        %v1434 = vpop.f32.mrb[0].mxu0
        %v1435 = vadd.f32 %v483, %v1434
        %v1436 = vpop.f32.mrb[0].mxu0
        %1437 = vmatprep.mubr.bf16.mxu0 0
        %1438 = vmatmul.mubr.bf16.gmra.mrb[0].mxu0 %v1010
        %v1439 = vpop.f32.mrb[0].mxu0
        %v1440 = vadd.f32 %v483, %v1439
        %v1441 = vpop.f32.mrb[0].mxu0
        %v1442 = vpop.f32.mrb[0].mxu0
        %v1443 = vadd.f32 %v483, %v1442
        %v1444 = vpop.f32.mrb[0].mxu0
        %1445 = vmatprep.mubr.bf16.mxu0 0
        %1446 = vmatmul.mubr.bf16.gmra.mrb[0].mxu0 %v1011
        %v1447 = vpop.f32.mrb[0].mxu0
        %v1448 = vadd.f32 %v483, %v1447
        %v1449 = vpop.f32.mrb[0].mxu0
        %v1450 = vpop.f32.mrb[0].mxu0
        %v1451 = vadd.f32 %v483, %v1450
        %v1452 = vpop.f32.mrb[0].mxu0
        %1453 = vmatprep.mubr.bf16.mxu0 0
        %1454 = vmatmul.mubr.bf16.gmra.mrb[0].mxu0 %v1012
        %v1455 = vpop.f32.mrb[0].mxu0
        %v1456 = vadd.f32 %v483, %v1455
        %v1457 = vpop.f32.mrb[0].mxu0
        %v1458 = vpop.f32.mrb[0].mxu0
        %v1459 = vadd.f32 %v483, %v1458
        %v1460 = vpop.f32.mrb[0].mxu0
        %1461 = vmatprep.mubr.bf16.mxu0 0
        %1462 = vmatmul.mubr.bf16.gmra.mrb[0].mxu0 %v1013
        %v1463 = vpop.f32.mrb[0].mxu0
        %v1464 = vadd.f32 %v483, %v1463
        %v1465 = vpop.f32.mrb[0].mxu0
        %v1466 = vpop.f32.mrb[0].mxu0
        %v1467 = vadd.f32 %v483, %v1466
        %v1468 = vpop.f32.mrb[0].mxu0
        %1469 = vmatprep.mubr.bf16.mxu0 0
        %1470 = vmatmul.mubr.bf16.gmra.mrb[0].mxu0 %v1014
        %v1471 = vpop.f32.mrb[0].mxu0
        %v1472 = vadd.f32 %v483, %v1471
        %v1473 = vpop.f32.mrb[0].mxu0
        %v1474 = vpop.f32.mrb[0].mxu0
        %v1475 = vadd.f32 %v483, %v1474
        %v1476 = vpop.f32.mrb[0].mxu0
        %1477 = vmatprep.mubr.bf16.mxu0 0
        %1478 = vmatmul.mubr.bf16.gmra.mrb[0].mxu0 %v1015
        %v1479 = vpop.f32.mrb[0].mxu0
        %v1480 = vadd.f32 %v483, %v1479
        %v1481 = vpop.f32.mrb[0].mxu0
        %v1482 = vpop.f32.mrb[0].mxu0
        %v1483 = vadd.f32 %v483, %v1482
        %v1484 = vpop.f32.mrb[0].mxu0
        %1485 = vmatprep.mubr.bf16.mxu0 0
        %1486 = vmatmul.mubr.bf16.gmra.mrb[0].mxu0 %v1016
        %v1487 = vpop.f32.mrb[0].mxu0
        %v1488 = vadd.f32 %v483, %v1487
        %v1489 = vpop.f32.mrb[0].mxu0
        %v1490 = vpop.f32.mrb[0].mxu0
        %v1491 = vadd.f32 %v483, %v1490
        %v1492 = vpop.f32.mrb[0].mxu0
        %1493 = vmatprep.mubr.bf16.mxu0 0
        %1494 = vmatmul.mubr.bf16.gmra.mrb[0].mxu0 %v1017
        %v1495 = vpop.f32.mrb[0].mxu0
        %v1496 = vadd.f32 %v483, %v1495
        %v1497 = vpop.f32.mrb[0].mxu0
        %v1498 = vpop.f32.mrb[0].mxu0
        %v1499 = vadd.f32 %v483, %v1498
        %v1500 = vpop.f32.mrb[0].mxu0
        %1501 = vmatprep.mubr.bf16.mxu0 0
        %1502 = vmatmul.mubr.bf16.gmra.mrb[0].mxu0 %v1018
        %v1503 = vpop.f32.mrb[0].mxu0
        %v1504 = vadd.f32 %v483, %v1503
        %v1505 = vpop.f32.mrb[0].mxu0
        %v1506 = vpop.f32.mrb[0].mxu0
        %v1507 = vadd.f32 %v483, %v1506
        %v1508 = vpop.f32.mrb[0].mxu0
        %1509 = vmatprep.mubr.bf16.mxu0 0
        %1510 = vmatmul.mubr.bf16.gmra.mrb[0].mxu0 %v1019
        %v1511 = vpop.f32.mrb[0].mxu0
        %v1512 = vadd.f32 %v483, %v1511
        %v1513 = vpop.f32.mrb[0].mxu0
        %v1514 = vpop.f32.mrb[0].mxu0
        %v1515 = vadd.f32 %v483, %v1514
        %v1516 = vpop.f32.mrb[0].mxu0
        %1517 = vmatprep.mubr.bf16.mxu0 0
        %1518 = vmatmul.mubr.bf16.gmra.mrb[0].mxu0 %v1020
        %v1519 = vpop.f32.mrb[0].mxu0
        %v1520 = vadd.f32 %v483, %v1519
        %v1521 = vpop.f32.mrb[0].mxu0
        %v1522 = vpop.f32.mrb[0].mxu0
        %v1523 = vadd.f32 %v483, %v1522
        %v1524 = vpop.f32.mrb[0].mxu0
        %1525 = vmatprep.mubr.bf16.mxu0 0
        %1526 = vmatmul.mubr.bf16.gmra.mrb[0].mxu0 %v1021
        %v1527 = vpop.f32.mrb[0].mxu0
        %v1528 = vadd.f32 %v483, %v1527
        %v1529 = vpop.f32.mrb[0].mxu0
        %v1530 = vpop.f32.mrb[0].mxu0
        %v1531 = vadd.f32 %v483, %v1530
        %v1532 = vpop.f32.mrb[0].mxu0
        %1533 = vmatprep.mubr.bf16.mxu0 0
        %1534 = vmatmul.mubr.bf16.gmra.mrb[0].mxu0 %v1022
        %v1535 = vpop.f32.mrb[0].mxu0
        %v1536 = vadd.f32 %v483, %v1535
        %v1537 = vpop.f32.mrb[0].mxu0
        %v1538 = vpop.f32.mrb[0].mxu0
        %v1539 = vadd.f32 %v483, %v1538
        %v1540 = vpop.f32.mrb[0].mxu0
        %1541 = vmatprep.mubr.bf16.mxu0 0
        %1542 = vmatmul.mubr.bf16.gmra.mrb[0].mxu0 %v1023
        %v1543 = vpop.f32.mrb[0].mxu0
        %v1544 = vadd.f32 %v483, %v1543
        %v1545 = vpop.f32.mrb[0].mxu0
        %v1546 = vpop.f32.mrb[0].mxu0
        %v1547 = vadd.f32 %v483, %v1546
        %v1548 = vpop.f32.mrb[0].mxu0
        %1549 = vmatprep.mubr.bf16.mxu0 0
        %1550 = vmatmul.mubr.bf16.gmra.mrb[0].mxu0 %v1024
        %v1551 = vpop.f32.mrb[0].mxu0
        %v1552 = vadd.f32 %v483, %v1551
        %v1553 = vpop.f32.mrb[0].mxu0
        %v1554 = vpop.f32.mrb[0].mxu0
        %v1555 = vadd.f32 %v483, %v1554
        %v1556 = vpop.f32.mrb[0].mxu0
        %1557 = vmatprep.mubr.bf16.mxu0 0
        %1558 = vmatmul.mubr.bf16.gmra.mrb[0].mxu0 %v1025
        %v1559 = vpop.f32.mrb[0].mxu0
        %v1560 = vadd.f32 %v483, %v1559
        %v1561 = vpop.f32.mrb[0].mxu0
        %v1562 = vpop.f32.mrb[0].mxu0
        %v1563 = vadd.f32 %v483, %v1562
        %v1564 = vpop.f32.mrb[0].mxu0
        %1565 = vmatprep.mubr.bf16.mxu0 0
        %1566 = vmatmul.mubr.bf16.gmra.mrb[0].mxu0 %v1026
        %v1567 = vpop.f32.mrb[0].mxu0
        %v1568 = vadd.f32 %v483, %v1567
        %v1569 = vpop.f32.mrb[0].mxu0
        %v1570 = vpop.f32.mrb[0].mxu0
        %v1571 = vadd.f32 %v483, %v1570
        %v1572 = vpop.f32.mrb[0].mxu0
        %1573 = vmatprep.mubr.bf16.mxu0 0
        %1574 = vmatmul.mubr.bf16.gmra.mrb[0].mxu0 %v1027
        %v1575 = vpop.f32.mrb[0].mxu0
        %v1576 = vadd.f32 %v483, %v1575
        %v1577 = vpop.f32.mrb[0].mxu0
        %v1578 = vpop.f32.mrb[0].mxu0
        %v1579 = vadd.f32 %v483, %v1578
        %v1580 = vpop.f32.mrb[0].mxu0
        %1581 = vmatprep.mubr.bf16.mxu0 0
        %1582 = vmatmul.mubr.bf16.gmra.mrb[0].mxu0 %v1028
        %v1583 = vpop.f32.mrb[0].mxu0
        %v1584 = vadd.f32 %v483, %v1583
        %v1585 = vpop.f32.mrb[0].mxu0
        %v1586 = vpop.f32.mrb[0].mxu0
        %v1587 = vadd.f32 %v483, %v1586
        %v1588 = vpop.f32.mrb[0].mxu0
        %1589 = vmatprep.mubr.bf16.mxu0 0
        %1590 = vmatmul.mubr.bf16.gmra.mrb[0].mxu0 %v1029
        %v1591 = vpop.f32.mrb[0].mxu0
        %v1592 = vadd.f32 %v483, %v1591
        %v1593 = vpop.f32.mrb[0].mxu0
        %v1594 = vpop.f32.mrb[0].mxu0
        %v1595 = vadd.f32 %v483, %v1594
        %v1596 = vpop.f32.mrb[0].mxu0
        %1597 = vmatprep.mubr.bf16.mxu0 0
        %1598 = vmatmul.mubr.bf16.gmra.mrb[0].mxu0 %v1030
        %v1599 = vpop.f32.mrb[0].mxu0
        %v1600 = vadd.f32 %v483, %v1599
        %v1601 = vpop.f32.mrb[0].mxu0
        %v1602 = vpop.f32.mrb[0].mxu0
        %v1603 = vadd.f32 %v483, %v1602
        %v1604 = vpop.f32.mrb[0].mxu0
        %1605 = vmatprep.mubr.bf16.mxu0 0
        %1606 = vmatmul.mubr.bf16.gmra.mrb[0].mxu0 %v1031
        %v1607 = vpop.f32.mrb[0].mxu0
        %v1608 = vadd.f32 %v483, %v1607
        %v1609 = vpop.f32.mrb[0].mxu0
        %v1610 = vpop.f32.mrb[0].mxu0
        %v1611 = vadd.f32 %v483, %v1610
        %v1612 = vpop.f32.mrb[0].mxu0
        %1613 = vmatprep.mubr.bf16.mxu0 0
        %1614 = vmatmul.mubr.bf16.gmra.mrb[0].mxu0 %v1032
        %v1615 = vpop.f32.mrb[0].mxu0
        %v1616 = vadd.f32 %v483, %v1615
        %v1617 = vpop.f32.mrb[0].mxu0
        %v1618 = vpop.f32.mrb[0].mxu0
        %v1619 = vadd.f32 %v483, %v1618
        %v1620 = vpop.f32.mrb[0].mxu0
        %1621 = vmatprep.mubr.bf16.mxu0 0
        %1622 = vmatmul.mubr.bf16.gmra.mrb[0].mxu0 %v1033
        %v1623 = vpop.f32.mrb[0].mxu0
        %v1624 = vadd.f32 %v483, %v1623
        %v1625 = vpop.f32.mrb[0].mxu0
        %v1626 = vpop.f32.mrb[0].mxu0
        %v1627 = vadd.f32 %v483, %v1626
        %v1628 = vpop.f32.mrb[0].mxu0
        %1629 = vmatprep.mubr.bf16.mxu0 0
        %1630 = vmatmul.mubr.bf16.gmra.mrb[0].mxu0 %v1034
        %v1631 = vpop.f32.mrb[0].mxu0
        %v1632 = vadd.f32 %v483, %v1631
        %v1633 = vpop.f32.mrb[0].mxu0
        %v1634 = vpop.f32.mrb[0].mxu0
        %v1635 = vadd.f32 %v483, %v1634
        %v1636 = vpop.f32.mrb[0].mxu0
        %1637 = vmatprep.mubr.bf16.mxu0 0
        %1638 = vmatmul.mubr.bf16.gmra.mrb[0].mxu0 %v1035
        %v1639 = vpop.f32.mrb[0].mxu0
        %v1640 = vadd.f32 %v483, %v1639
        %v1641 = vpop.f32.mrb[0].mxu0
        %v1642 = vpop.f32.mrb[0].mxu0
        %v1643 = vadd.f32 %v483, %v1642
        %v1644 = vpop.f32.mrb[0].mxu0
        %1645 = vmatprep.mubr.bf16.mxu0 0
        %1646 = vmatmul.mubr.bf16.gmra.mrb[0].mxu0 %v1036
        %v1647 = vpop.f32.mrb[0].mxu0
        %v1648 = vadd.f32 %v483, %v1647
        %v1649 = vpop.f32.mrb[0].mxu0
        %v1650 = vpop.f32.mrb[0].mxu0
        %v1651 = vadd.f32 %v483, %v1650
        %v1652 = vpop.f32.mrb[0].mxu0
        %1653 = vmatprep.mubr.bf16.mxu0 0
        %1654 = vmatmul.mubr.bf16.gmra.mrb[0].mxu0 %v1037
        %v1655 = vpop.f32.mrb[0].mxu0
        %v1656 = vadd.f32 %v483, %v1655
        %v1657 = vpop.f32.mrb[0].mxu0
        %v1658 = vpop.f32.mrb[0].mxu0
        %v1659 = vadd.f32 %v483, %v1658
        %v1660 = vpop.f32.mrb[0].mxu0
        %1661 = vmatprep.mubr.bf16.mxu0 0
        %1662 = vmatmul.mubr.bf16.gmra.mrb[0].mxu0 %v1038
        %v1663 = vpop.f32.mrb[0].mxu0
        %v1664 = vadd.f32 %v483, %v1663
        %v1665 = vpop.f32.mrb[0].mxu0
        %v1666 = vpop.f32.mrb[0].mxu0
        %v1667 = vadd.f32 %v483, %v1666
        %v1668 = vpop.f32.mrb[0].mxu0
        %1669 = vmatprep.mubr.bf16.mxu0 0
        %1670 = vmatmul.mubr.bf16.gmra.mrb[0].mxu0 %v1039
        %v1671 = vpop.f32.mrb[0].mxu0
        %v1672 = vadd.f32 %v483, %v1671
        %v1673 = vpop.f32.mrb[0].mxu0
        %v1674 = vpop.f32.mrb[0].mxu0
        %v1675 = vadd.f32 %v483, %v1674
        %v1676 = vpop.f32.mrb[0].mxu0
        %1677 = vmatprep.mubr.bf16.mxu0 0
        %1678 = vmatmul.mubr.bf16.gmra.mrb[0].mxu0 %v1040
        %v1679 = vpop.f32.mrb[0].mxu0
        %v1680 = vadd.f32 %v483, %v1679
        %v1681 = vpop.f32.mrb[0].mxu0
        %v1682 = vpop.f32.mrb[0].mxu0
        %v1683 = vadd.f32 %v483, %v1682
        %v1684 = vpop.f32.mrb[0].mxu0
        %1685 = vmatprep.mubr.bf16.mxu0 0
        %1686 = vmatmul.mubr.bf16.gmra.mrb[0].mxu0 %v1041
        %v1687 = vpop.f32.mrb[0].mxu0
        %v1688 = vadd.f32 %v483, %v1687
        %v1689 = vpop.f32.mrb[0].mxu0
        %v1690 = vpop.f32.mrb[0].mxu0
        %v1691 = vadd.f32 %v483, %v1690
        %v1692 = vpop.f32.mrb[0].mxu0
        %1693 = vmatprep.mubr.bf16.mxu0 0
        %1694 = vmatmul.mubr.bf16.gmra.mrb[0].mxu0 %v1042
        %v1695 = vpop.f32.mrb[0].mxu0
        %v1696 = vadd.f32 %v483, %v1695
        %v1697 = vpop.f32.mrb[0].mxu0
        %v1698 = vpop.f32.mrb[0].mxu0
        %v1699 = vadd.f32 %v483, %v1698
        %v1700 = vpop.f32.mrb[0].mxu0
        %1701 = vmatprep.mubr.bf16.mxu0 0
        %1702 = vmatmul.mubr.bf16.gmra.mrb[0].mxu0 %v1043
        %v1703 = vpop.f32.mrb[0].mxu0
        %v1704 = vadd.f32 %v483, %v1703
        %v1705 = vpop.f32.mrb[0].mxu0
        %v1706 = vpop.f32.mrb[0].mxu0
        %v1707 = vadd.f32 %v483, %v1706
        %v1708 = vpop.f32.mrb[0].mxu0
        %1709 = vmatprep.mubr.bf16.mxu0 0
        %1710 = vmatmul.mubr.bf16.gmra.mrb[0].mxu0 %v1044
        %v1711 = vpop.f32.mrb[0].mxu0
        %v1712 = vadd.f32 %v483, %v1711
        %v1713 = vpop.f32.mrb[0].mxu0
        %v1714 = vpop.f32.mrb[0].mxu0
        %v1715 = vadd.f32 %v483, %v1714
        %v1716 = vpop.f32.mrb[0].mxu0
        %1717 = vmatprep.mubr.bf16.mxu0 0
        %1718 = vmatmul.mubr.bf16.gmra.mrb[0].mxu0 %v1045
        %v1719 = vpop.f32.mrb[0].mxu0
        %v1720 = vadd.f32 %v483, %v1719
        %v1721 = vpop.f32.mrb[0].mxu0
        %v1722 = vpop.f32.mrb[0].mxu0
        %v1723 = vadd.f32 %v483, %v1722
        %v1724 = vpop.f32.mrb[0].mxu0
        %1725 = vmatprep.mubr.bf16.mxu0 0
        %1726 = vmatmul.mubr.bf16.gmra.mrb[0].mxu0 %v1046
        %v1727 = vpop.f32.mrb[0].mxu0
        %v1728 = vadd.f32 %v483, %v1727
        %v1729 = vpop.f32.mrb[0].mxu0
        %v1730 = vpop.f32.mrb[0].mxu0
        %v1731 = vadd.f32 %v483, %v1730
        %v1732 = vpop.f32.mrb[0].mxu0
        %1733 = vmatprep.mubr.bf16.mxu0 0
        %1734 = vmatmul.mubr.bf16.gmra.mrb[0].mxu0 %v1047
        %v1735 = vpop.f32.mrb[0].mxu0
        %v1736 = vadd.f32 %v483, %v1735
        %v1737 = vpop.f32.mrb[0].mxu0
        %v1738 = vpop.f32.mrb[0].mxu0
        %v1739 = vadd.f32 %v483, %v1738
        %v1740 = vpop.f32.mrb[0].mxu0
        %1741 = vmatprep.mubr.bf16.mxu0 0
        %1742 = vmatmul.mubr.bf16.gmra.mrb[0].mxu0 %v1048
        %v1743 = vpop.f32.mrb[0].mxu0
        %v1744 = vadd.f32 %v483, %v1743
        %v1745 = vpop.f32.mrb[0].mxu0
        %v1746 = vpop.f32.mrb[0].mxu0
        %v1747 = vadd.f32 %v483, %v1746
        %v1748 = vpop.f32.mrb[0].mxu0
        %1749 = vmatprep.mubr.bf16.mxu0 0
        %1750 = vmatmul.mubr.bf16.gmra.mrb[0].mxu0 %v1049
        %v1751 = vpop.f32.mrb[0].mxu0
        %v1752 = vadd.f32 %v483, %v1751
        %v1753 = vpop.f32.mrb[0].mxu0
        %v1754 = vpop.f32.mrb[0].mxu0
        %v1755 = vadd.f32 %v483, %v1754
        %v1756 = vpop.f32.mrb[0].mxu0
        %1757 = vmatprep.mubr.bf16.mxu0 0
        %1758 = vmatmul.mubr.bf16.gmra.mrb[0].mxu0 %v1050
        %v1759 = vpop.f32.mrb[0].mxu0
        %v1760 = vadd.f32 %v483, %v1759
        %v1761 = vpop.f32.mrb[0].mxu0
        %v1762 = vpop.f32.mrb[0].mxu0
        %v1763 = vadd.f32 %v483, %v1762
        %v1764 = vpop.f32.mrb[0].mxu0
        %1765 = vmatprep.mubr.bf16.mxu0 0
        %1766 = vmatmul.mubr.bf16.gmra.mrb[0].mxu0 %v1051
        %v1767 = vpop.f32.mrb[0].mxu0
        %v1768 = vadd.f32 %v483, %v1767
        %v1769 = vpop.f32.mrb[0].mxu0
        %v1770 = vpop.f32.mrb[0].mxu0
        %v1771 = vadd.f32 %v483, %v1770
        %v1772 = vpop.f32.mrb[0].mxu0
        %1773 = vmatprep.mubr.bf16.mxu0 0
        %1774 = vmatmul.mubr.bf16.gmra.mrb[0].mxu0 %v1052
        %v1775 = vpop.f32.mrb[0].mxu0
        %v1776 = vadd.f32 %v483, %v1775
        %v1777 = vpop.f32.mrb[0].mxu0
        %v1778 = vpop.f32.mrb[0].mxu0
        %v1779 = vadd.f32 %v483, %v1778
        %v1780 = vpop.f32.mrb[0].mxu0
        %1781 = vmatprep.mubr.bf16.mxu0 0
        %1782 = vmatmul.mubr.bf16.gmra.mrb[0].mxu0 %v1053
        %v1783 = vpop.f32.mrb[0].mxu0
        %v1784 = vadd.f32 %v483, %v1783
        %v1785 = vpop.f32.mrb[0].mxu0
        %v1786 = vpop.f32.mrb[0].mxu0
        %v1787 = vadd.f32 %v483, %v1786
        %v1788 = vpop.f32.mrb[0].mxu0
        %1789 = vmatprep.mubr.bf16.mxu0 0
        %1790 = vmatmul.mubr.bf16.gmra.mrb[0].mxu0 %v1054
        %v1791 = vpop.f32.mrb[0].mxu0
        %v1792 = vadd.f32 %v483, %v1791
        %v1793 = vpop.f32.mrb[0].mxu0
        %v1794 = vpop.f32.mrb[0].mxu0
        %v1795 = vadd.f32 %v483, %v1794
        %v1796 = vpop.f32.mrb[0].mxu0
        %1797 = vmatprep.mubr.bf16.mxu0 0
        %1798 = vmatmul.mubr.bf16.gmra.mrb[0].mxu0 %v1055
        %v1799 = vpop.f32.mrb[0].mxu0
        %v1800 = vadd.f32 %v483, %v1799
        %v1801 = vpop.f32.mrb[0].mxu0
        %v1802 = vpop.f32.mrb[0].mxu0
        %v1803 = vadd.f32 %v483, %v1802
        %v1804 = vpop.f32.mrb[0].mxu0
        %1805 = vmatprep.mubr.bf16.mxu0 0
        %1806 = vmatmul.mubr.bf16.gmra.mrb[0].mxu0 %v1056
        %v1807 = vpop.f32.mrb[0].mxu0
        %v1808 = vadd.f32 %v483, %v1807
        %v1809 = vpop.f32.mrb[0].mxu0
        %v1810 = vpop.f32.mrb[0].mxu0
        %v1811 = vadd.f32 %v483, %v1810
        %v1812 = vpop.f32.mrb[0].mxu0
        %1813 = vmatprep.mubr.bf16.mxu0 0
        %1814 = vmatmul.mubr.bf16.gmra.mrb[0].mxu0 %v1057
        %v1815 = vpop.f32.mrb[0].mxu0
        %v1816 = vadd.f32 %v483, %v1815
        %v1817 = vpop.f32.mrb[0].mxu0
        %v1818 = vpop.f32.mrb[0].mxu0
        %v1819 = vadd.f32 %v483, %v1818
        %v1820 = vpop.f32.mrb[0].mxu0
        %1821 = vmatprep.mubr.bf16.mxu0 0
        %1822 = vmatmul.mubr.bf16.gmra.mrb[0].mxu0 %v1058
        %v1823 = vpop.f32.mrb[0].mxu0
        %v1824 = vadd.f32 %v483, %v1823
        %v1825 = vpop.f32.mrb[0].mxu0
        %v1826 = vpop.f32.mrb[0].mxu0
        %v1827 = vadd.f32 %v483, %v1826
        %v1828 = vpop.f32.mrb[0].mxu0
        %1829 = vmatprep.mubr.bf16.mxu0 0
        %1830 = vmatmul.mubr.bf16.gmra.mrb[0].mxu0 %v1059
        %v1831 = vpop.f32.mrb[0].mxu0
        %v1832 = vadd.f32 %v483, %v1831
        %v1833 = vpop.f32.mrb[0].mxu0
        %v1834 = vpop.f32.mrb[0].mxu0
        %v1835 = vadd.f32 %v483, %v1834
        %v1836 = vpop.f32.mrb[0].mxu0
        %1837 = vmatprep.mubr.bf16.mxu0 0
        %1838 = vmatmul.mubr.bf16.gmra.mrb[0].mxu0 %v1060
        %v1839 = vpop.f32.mrb[0].mxu0
        %v1840 = vadd.f32 %v483, %v1839
        %v1841 = vpop.f32.mrb[0].mxu0
        %v1842 = vpop.f32.mrb[0].mxu0
        %v1843 = vadd.f32 %v483, %v1842
        %v1844 = vpop.f32.mrb[0].mxu0
        %1845 = vmatprep.mubr.bf16.mxu0 0
        %1846 = vmatmul.mubr.bf16.gmra.mrb[0].mxu0 %v1061
        %v1847 = vpop.f32.mrb[0].mxu0
        %v1848 = vadd.f32 %v483, %v1847
        %v1849 = vpop.f32.mrb[0].mxu0
        %v1850 = vpop.f32.mrb[0].mxu0
        %v1851 = vadd.f32 %v483, %v1850
        %v1852 = vpop.f32.mrb[0].mxu0
        %1853 = vmatprep.mubr.bf16.mxu0 0
        %1854 = vmatmul.mubr.bf16.gmra.mrb[0].mxu0 %v1062
        %v1855 = vpop.f32.mrb[0].mxu0
        %v1856 = vadd.f32 %v483, %v1855
        %v1857 = vpop.f32.mrb[0].mxu0
        %v1858 = vpop.f32.mrb[0].mxu0
        %v1859 = vadd.f32 %v483, %v1858
        %v1860 = vpop.f32.mrb[0].mxu0
        %1861 = vmatprep.mubr.bf16.mxu0 0
        %1862 = vmatmul.mubr.bf16.gmra.mrb[0].mxu0 %v1063
        %v1863 = vpop.f32.mrb[0].mxu0
        %v1864 = vadd.f32 %v483, %v1863
        %v1865 = vpop.f32.mrb[0].mxu0
        %v1866 = vpop.f32.mrb[0].mxu0
        %v1867 = vadd.f32 %v483, %v1866
        %v1868 = vpop.f32.mrb[0].mxu0
        %1869 = vmatprep.mubr.bf16.mxu0 0
        %1870 = vmatmul.mubr.bf16.gmra.mrb[0].mxu0 %v1064
        %v1871 = vpop.f32.mrb[0].mxu0
        %v1872 = vadd.f32 %v483, %v1871
        %v1873 = vpop.f32.mrb[0].mxu0
        %v1874 = vpop.f32.mrb[0].mxu0
        %v1875 = vadd.f32 %v483, %v1874
        %v1876 = vpop.f32.mrb[0].mxu0
        %1877 = vmatprep.mubr.bf16.mxu0 0
        %1878 = vmatmul.mubr.bf16.gmra.mrb[0].mxu0 %v1065
        %v1879 = vpop.f32.mrb[0].mxu0
        %v1880 = vadd.f32 %v483, %v1879
        %v1881 = vpop.f32.mrb[0].mxu0
        %v1882 = vpop.f32.mrb[0].mxu0
        %v1883 = vadd.f32 %v483, %v1882
        %v1884 = vpop.f32.mrb[0].mxu0
        %1885 = vmatprep.mubr.bf16.mxu0 0
        %1886 = vmatmul.mubr.bf16.gmra.mrb[0].mxu0 %v1066
        %v1887 = vpop.f32.mrb[0].mxu0
        %v1888 = vadd.f32 %v483, %v1887
        %v1889 = vpop.f32.mrb[0].mxu0
        %v1890 = vpop.f32.mrb[0].mxu0
        %v1891 = vadd.f32 %v483, %v1890
        %v1892 = vpop.f32.mrb[0].mxu0
        %1893 = vmatprep.mubr.bf16.mxu0 0
        %1894 = vmatmul.mubr.bf16.gmra.mrb[0].mxu0 %v1067
        %v1895 = vpop.f32.mrb[0].mxu0
        %v1896 = vadd.f32 %v483, %v1895
        %v1897 = vpop.f32.mrb[0].mxu0
        %v1898 = vpop.f32.mrb[0].mxu0
        %v1899 = vadd.f32 %v483, %v1898
        %v1900 = vpop.f32.mrb[0].mxu0
        %1901 = vmatprep.mubr.bf16.mxu0 0
        %1902 = vmatmul.mubr.bf16.gmra.mrb[0].mxu0 %v1068
        %v1903 = vpop.f32.mrb[0].mxu0
        %v1904 = vadd.f32 %v483, %v1903
        %v1905 = vpop.f32.mrb[0].mxu0
        %v1906 = vpop.f32.mrb[0].mxu0
        %v1907 = vadd.f32 %v483, %v1906
        %v1908 = vpop.f32.mrb[0].mxu0
        %1909 = vmatprep.mubr.bf16.mxu0 0
        %1910 = vmatmul.mubr.bf16.gmra.mrb[0].mxu0 %v1069
        %v1911 = vpop.f32.mrb[0].mxu0
        %v1912 = vadd.f32 %v483, %v1911
        %v1913 = vpop.f32.mrb[0].mxu0
        %v1914 = vpop.f32.mrb[0].mxu0
        %v1915 = vadd.f32 %v483, %v1914
        %v1916 = vpop.f32.mrb[0].mxu0
        %1917 = vmatprep.mubr.bf16.mxu0 0
        %1918 = vmatmul.mubr.bf16.gmra.mrb[0].mxu0 %v1070
        %v1919 = vpop.f32.mrb[0].mxu0
        %v1920 = vadd.f32 %v483, %v1919
        %v1921 = vpop.f32.mrb[0].mxu0
        %v1922 = vpop.f32.mrb[0].mxu0
        %v1923 = vadd.f32 %v483, %v1922
        %v1924 = vpop.f32.mrb[0].mxu0
        %1925 = vmatprep.mubr.bf16.mxu0 0
        %1926 = vmatmul.mubr.bf16.gmra.mrb[0].mxu0 %v1071
        %v1927 = vpop.f32.mrb[0].mxu0
        %v1928 = vadd.f32 %v483, %v1927
        %v1929 = vpop.f32.mrb[0].mxu0
        %v1930 = vpop.f32.mrb[0].mxu0
        %v1931 = vadd.f32 %v483, %v1930
        %v1932 = vpop.f32.mrb[0].mxu0
        %1933 = vmatprep.mubr.bf16.mxu0 0
        %1934 = vmatmul.mubr.bf16.gmra.mrb[0].mxu0 %v1072
        %v1935 = vpop.f32.mrb[0].mxu0
        %v1936 = vadd.f32 %v483, %v1935
        %v1937 = vpop.f32.mrb[0].mxu0
        %v1938 = vpop.f32.mrb[0].mxu0
        %v1939 = vadd.f32 %v483, %v1938
        %v1940 = vpop.f32.mrb[0].mxu0
        %1941 = vmatprep.mubr.bf16.mxu0 0
        %1942 = vmatmul.mubr.bf16.gmra.mrb[0].mxu0 %v1073
        %v1943 = vpop.f32.mrb[0].mxu0
        %v1944 = vadd.f32 %v483, %v1943
        %v1945 = vpop.f32.mrb[0].mxu0
        %v1946 = vpop.f32.mrb[0].mxu0
        %v1947 = vadd.f32 %v483, %v1946
        %v1948 = vpop.f32.mrb[0].mxu0
        %1949 = vmatprep.mubr.bf16.mxu0 0
        %1950 = vmatmul.mubr.bf16.gmra.mrb[0].mxu0 %v1074
        %v1951 = vpop.f32.mrb[0].mxu0
        %v1952 = vadd.f32 %v483, %v1951
        %v1953 = vpop.f32.mrb[0].mxu0
        %v1954 = vpop.f32.mrb[0].mxu0
        %v1955 = vadd.f32 %v483, %v1954
        %v1956 = vpop.f32.mrb[0].mxu0
        %1957 = vmatprep.mubr.bf16.mxu0 0
        %1958 = vmatmul.mubr.bf16.gmra.mrb[0].mxu0 %v1075
        %v1959 = vpop.f32.mrb[0].mxu0
        %v1960 = vadd.f32 %v483, %v1959
        %v1961 = vpop.f32.mrb[0].mxu0
        %v1962 = vpop.f32.mrb[0].mxu0
        %v1963 = vadd.f32 %v483, %v1962
        %v1964 = vpop.f32.mrb[0].mxu0
        %1965 = vmatprep.mubr.bf16.mxu0 0
        %1966 = vmatmul.mubr.bf16.gmra.mrb[0].mxu0 %v1076
        %v1967 = vpop.f32.mrb[0].mxu0
        %v1968 = vadd.f32 %v483, %v1967
        %v1969 = vpop.f32.mrb[0].mxu0
        %v1970 = vpop.f32.mrb[0].mxu0
        %v1971 = vadd.f32 %v483, %v1970
        %v1972 = vpop.f32.mrb[0].mxu0
        %1973 = vmatprep.mubr.bf16.mxu0 0
        %1974 = vmatmul.mubr.bf16.gmra.mrb[0].mxu0 %v1077
        %v1975 = vpop.f32.mrb[0].mxu0
        %v1976 = vadd.f32 %v483, %v1975
        %v1977 = vpop.f32.mrb[0].mxu0
        %v1978 = vpop.f32.mrb[0].mxu0
        %v1979 = vadd.f32 %v483, %v1978
        %v1980 = vpop.f32.mrb[0].mxu0
        %1981 = vmatprep.mubr.bf16.mxu0 0
        %1982 = vmatmul.mubr.bf16.gmra.mrb[0].mxu0 %v1078
        %v1983 = vpop.f32.mrb[0].mxu0
        %v1984 = vadd.f32 %v483, %v1983
        %v1985 = vpop.f32.mrb[0].mxu0
        %v1986 = vpop.f32.mrb[0].mxu0
        %v1987 = vadd.f32 %v483, %v1986
        %v1988 = vpop.f32.mrb[0].mxu0
        %1989 = vmatprep.mubr.bf16.mxu0 0
        %1990 = vmatmul.mubr.bf16.gmra.mrb[0].mxu0 %v1079
        %v1991 = vpop.f32.mrb[0].mxu0
        %v1992 = vadd.f32 %v483, %v1991
        %v1993 = vpop.f32.mrb[0].mxu0
        %v1994 = vpop.f32.mrb[0].mxu0
        %v1995 = vadd.f32 %v483, %v1994
        %v1996 = vpop.f32.mrb[0].mxu0
        %1997 = vmatprep.mubr.bf16.mxu0 0
        %1998 = vmatmul.mubr.bf16.gmra.mrb[0].mxu0 %v1080
        %v1999 = vpop.f32.mrb[0].mxu0
        %v2000 = vadd.f32 %v483, %v1999
        %v2001 = vpop.f32.mrb[0].mxu0
        %v2002 = vpop.f32.mrb[0].mxu0
        %v2003 = vadd.f32 %v483, %v2002
        %v2004 = vpop.f32.mrb[0].mxu0
        %2005 = vmatprep.mubr.bf16.mxu0 0
        %2006 = vmatmul.mubr.bf16.gmra.mrb[0].mxu0 %v1081
        %v2007 = vpop.f32.mrb[0].mxu0
        %v2008 = vadd.f32 %v483, %v2007
        %v2009 = vpop.f32.mrb[0].mxu0
        %v2010 = vpop.f32.mrb[0].mxu0
        %v2011 = vadd.f32 %v483, %v2010
        %v2012 = vpop.f32.mrb[0].mxu0
        %2013 = vmatprep.mubr.bf16.mxu0 0
        %2014 = vmatmul.mubr.bf16.gmra.mrb[0].mxu0 %v1082
        %v2015 = vpop.f32.mrb[0].mxu0
        %v2016 = vadd.f32 %v483, %v2015
        %v2017 = vpop.f32.mrb[0].mxu0
        %v2018 = vpop.f32.mrb[0].mxu0
        %v2019 = vadd.f32 %v483, %v2018
        %v2020 = vpop.f32.mrb[0].mxu0
        %2021 = vmatprep.mubr.bf16.mxu0 0
        %2022 = vmatmul.mubr.bf16.gmra.mrb[0].mxu0 %v1083
        %v2023 = vpop.f32.mrb[0].mxu0
        %v2024 = vadd.f32 %v483, %v2023
        %v2025 = vpop.f32.mrb[0].mxu0
        %v2026 = vpop.f32.mrb[0].mxu0
        %v2027 = vadd.f32 %v483, %v2026
        %v2028 = vpop.f32.mrb[0].mxu0
        %2029 = vmatprep.mubr.bf16.mxu0 0
        %2030 = vmatmul.mubr.bf16.gmra.mrb[0].mxu0 %v1084
        %v2031 = vpop.f32.mrb[0].mxu0
        %v2032 = vadd.f32 %v483, %v2031
        %v2033 = vpop.f32.mrb[0].mxu0
        %v2034 = vpop.f32.mrb[0].mxu0
        %v2035 = vadd.f32 %v483, %v2034
        %v2036 = vpop.f32.mrb[0].mxu0
        %2037 = vmatprep.mubr.bf16.mxu0 0
        %2038 = vmatmul.mubr.bf16.gmra.mrb[0].mxu0 %v1085
        %v2039 = vpop.f32.mrb[0].mxu0
        %v2040 = vadd.f32 %v483, %v2039
        %v2041 = vpop.f32.mrb[0].mxu0
        %v2042 = vpop.f32.mrb[0].mxu0
        %v2043 = vadd.f32 %v483, %v2042
        %v2044 = vpop.f32.mrb[0].mxu0
        %2045 = vmatprep.mubr.bf16.mxu0 0
        %2046 = vmatmul.mubr.bf16.gmra.mrb[0].mxu0 %v1086
        %v2047 = vpop.f32.mrb[0].mxu0
        %v2048 = vadd.f32 %v483, %v2047
        %v2049 = vpop.f32.mrb[0].mxu0
        %v2050 = vpop.f32.mrb[0].mxu0
        %v2051 = vadd.f32 %v483, %v2050
        %v2052 = vpop.f32.mrb[0].mxu0
        %2053 = vmatprep.mubr.bf16.mxu0 0
        %2054 = vmatmul.mubr.bf16.gmra.mrb[0].mxu0 %v1087
        %v2055 = vpop.f32.mrb[0].mxu0
        %v2056 = vadd.f32 %v483, %v2055
        %v2057 = vpop.f32.mrb[0].mxu0
        %v2058 = vpop.f32.mrb[0].mxu0
        %v2059 = vadd.f32 %v483, %v2058
        %v2060 = vpop.f32.mrb[0].mxu0
        %2061 = vmatprep.mubr.bf16.mxu0 0
        %2062 = vmatmul.mubr.bf16.gmra.mrb[0].mxu0 %v1088
        %v2063 = vpop.f32.mrb[0].mxu0
        %v2064 = vadd.f32 %v483, %v2063
        %v2065 = vpop.f32.mrb[0].mxu0
        %v2066 = vpop.f32.mrb[0].mxu0
        %v2067 = vadd.f32 %v483, %v2066
        %v2068 = vpop.f32.mrb[0].mxu0
        %2069 = vmatprep.mubr.bf16.mxu0 0
        %2070 = vmatmul.mubr.bf16.gmra.mrb[0].mxu0 %v1089
        %v2071 = vpop.f32.mrb[0].mxu0
        %v2072 = vadd.f32 %v483, %v2071
        %v2073 = vpop.f32.mrb[0].mxu0
        %v2074 = vpop.f32.mrb[0].mxu0
        %v2075 = vadd.f32 %v483, %v2074
        %v2076 = vpop.f32.mrb[0].mxu0
        %2077 = vmatprep.mubr.bf16.mxu0 0
        %2078 = vmatmul.mubr.bf16.gmra.mrb[0].mxu0 %v1090
        %v2079 = vpop.f32.mrb[0].mxu0
        %v2080 = vadd.f32 %v483, %v2079
        %v2081 = vpop.f32.mrb[0].mxu0
        %v2082 = vpop.f32.mrb[0].mxu0
        %v2083 = vadd.f32 %v483, %v2082
        %v2084 = vpop.f32.mrb[0].mxu0
        %2085 = vmatprep.mubr.bf16.mxu0 0
        %2086 = vmatmul.mubr.bf16.gmra.mrb[0].mxu0 %v1091
        %v2087 = vpop.f32.mrb[0].mxu0
        %v2088 = vadd.f32 %v483, %v2087
        %v2089 = vpop.f32.mrb[0].mxu0
        %v2090 = vpop.f32.mrb[0].mxu0
        %v2091 = vadd.f32 %v483, %v2090
        %v2092 = vpop.f32.mrb[0].mxu0
        %2093 = vmatprep.mubr.bf16.mxu0 0
        %2094 = vmatmul.mubr.bf16.gmra.mrb[0].mxu0 %v1092
        %v2095 = vpop.f32.mrb[0].mxu0
        %v2096 = vadd.f32 %v483, %v2095
        %v2097 = vpop.f32.mrb[0].mxu0
        %v2098 = vpop.f32.mrb[0].mxu0
        %v2099 = vadd.f32 %v483, %v2098
        %v2100 = vpop.f32.mrb[0].mxu0
        %2101 = vmatprep.mubr.bf16.mxu0 0
        %2102 = vmatmul.mubr.bf16.gmra.mrb[0].mxu0 %v1093
        %v2103 = vpop.f32.mrb[0].mxu0
        %v2104 = vadd.f32 %v483, %v2103
        %v2105 = vpop.f32.mrb[0].mxu0
        %v2106 = vpop.f32.mrb[0].mxu0
        %v2107 = vadd.f32 %v483, %v2106
        %v2108 = vpop.f32.mrb[0].mxu0
        %2109 = vmatprep.mubr.bf16.mxu0 0
        %2110 = vmatmul.mubr.bf16.gmra.mrb[0].mxu0 %v1094
        %v2111 = vpop.f32.mrb[0].mxu0
        %v2112 = vadd.f32 %v483, %v2111
        %v2113 = vpop.f32.mrb[0].mxu0
        %v2114 = vpop.f32.mrb[0].mxu0
        %v2115 = vadd.f32 %v483, %v2114
        %v2116 = vpop.f32.mrb[0].mxu0
        %2117 = vmatprep.mubr.bf16.mxu0 0
        %2118 = vmatmul.mubr.bf16.gmra.mrb[0].mxu0 %v1095
        %v2119 = vpop.f32.mrb[0].mxu0
        %v2120 = vadd.f32 %v483, %v2119
        %v2121 = vpop.f32.mrb[0].mxu0
        %v2122 = vpop.f32.mrb[0].mxu0
        %v2123 = vadd.f32 %v483, %v2122
        %v2124 = vpop.f32.mrb[0].mxu0
        %2125 = vmatprep.mubr.bf16.mxu0 0
        %2126 = vmatmul.mubr.bf16.gmra.mrb[0].mxu0 %v1096
        %v2127 = vpop.f32.mrb[0].mxu0
        %v2128 = vadd.f32 %v483, %v2127
        %v2129 = vpop.f32.mrb[0].mxu0
        %v2130 = vpop.f32.mrb[0].mxu0
        %v2131 = vadd.f32 %v483, %v2130
        %v2132 = vpop.f32.mrb[0].mxu0
        %2133 = vmatprep.mubr.bf16.mxu0 0
        %2134 = vmatmul.mubr.bf16.gmra.mrb[0].mxu0 %v1097
        %v2135 = vpop.f32.mrb[0].mxu0
        %v2136 = vadd.f32 %v483, %v2135
        %v2137 = vpop.f32.mrb[0].mxu0
        %v2138 = vpop.f32.mrb[0].mxu0
        %v2139 = vadd.f32 %v483, %v2138
        %v2140 = vpop.f32.mrb[0].mxu0
        %2141 = vmatprep.mubr.bf16.mxu0 0
        %2142 = vmatmul.mubr.bf16.gmra.mrb[0].mxu0 %v1098
        %v2143 = vpop.f32.mrb[0].mxu0
        %v2144 = vadd.f32 %v483, %v2143
        %v2145 = vpop.f32.mrb[0].mxu0
        %v2146 = vpop.f32.mrb[0].mxu0
        %v2147 = vadd.f32 %v483, %v2146
        %v2148 = vpop.f32.mrb[0].mxu0
        %2149 = vmatprep.mubr.bf16.mxu0 0
        %2150 = vmatmul.mubr.bf16.gmra.mrb[0].mxu0 %v1099
        %v2151 = vpop.f32.mrb[0].mxu0
        %v2152 = vadd.f32 %v483, %v2151
        %v2153 = vpop.f32.mrb[0].mxu0
        %v2154 = vpop.f32.mrb[0].mxu0
        %v2155 = vadd.f32 %v483, %v2154
        %v2156 = vpop.f32.mrb[0].mxu0
        %2157 = vmatprep.mubr.bf16.mxu0 0
        %2158 = vmatmul.mubr.bf16.gmra.mrb[0].mxu0 %v1100
        %v2159 = vpop.f32.mrb[0].mxu0
        %v2160 = vadd.f32 %v483, %v2159
        %v2161 = vpop.f32.mrb[0].mxu0
        %v2162 = vpop.f32.mrb[0].mxu0
        %v2163 = vadd.f32 %v483, %v2162
        %v2164 = vpop.f32.mrb[0].mxu0
        %2165 = vmatprep.mubr.bf16.mxu0 0
        %2166 = vmatmul.mubr.bf16.gmra.mrb[0].mxu0 %v1101
        %v2167 = vpop.f32.mrb[0].mxu0
        %v2168 = vadd.f32 %v483, %v2167
        %v2169 = vpop.f32.mrb[0].mxu0
        %v2170 = vpop.f32.mrb[0].mxu0
        %v2171 = vadd.f32 %v483, %v2170
        %v2172 = vpop.f32.mrb[0].mxu0
        %2173 = vmatprep.mubr.bf16.mxu0 0
        %2174 = vmatmul.mubr.bf16.gmra.mrb[0].mxu0 %v1102
        %v2175 = vpop.f32.mrb[0].mxu0
        %v2176 = vadd.f32 %v483, %v2175
        %v2177 = vpop.f32.mrb[0].mxu0
        %v2178 = vpop.f32.mrb[0].mxu0
        %v2179 = vadd.f32 %v483, %v2178
        %v2180 = vpop.f32.mrb[0].mxu0
        %2181 = vmatprep.mubr.bf16.mxu0 0
        %2182 = vmatmul.mubr.bf16.gmra.mrb[0].mxu0 %v1103
        %v2183 = vpop.f32.mrb[0].mxu0
        %v2184 = vadd.f32 %v483, %v2183
        %v2185 = vpop.f32.mrb[0].mxu0
        %v2186 = vpop.f32.mrb[0].mxu0
        %v2187 = vadd.f32 %v483, %v2186
        %v2188 = vpop.f32.mrb[0].mxu0
        %2189 = vmatprep.mubr.bf16.mxu0 0
        %2190 = vmatmul.mubr.bf16.gmra.mrb[0].mxu0 %v1104
        %v2191 = vpop.f32.mrb[0].mxu0
        %v2192 = vadd.f32 %v483, %v2191
        %v2193 = vpop.f32.mrb[0].mxu0
        %v2194 = vpop.f32.mrb[0].mxu0
        %v2195 = vadd.f32 %v483, %v2194
        %v2196 = vpop.f32.mrb[0].mxu0
        %2197 = vmatprep.mubr.bf16.mxu0 0
        %2198 = vmatmul.mubr.bf16.gmra.mrb[0].mxu0 %v1105
        %v2199 = vpop.f32.mrb[0].mxu0
        %v2200 = vadd.f32 %v483, %v2199
        %v2201 = vpop.f32.mrb[0].mxu0
        %v2202 = vpop.f32.mrb[0].mxu0
        %v2203 = vadd.f32 %v483, %v2202
        %v2204 = vpop.f32.mrb[0].mxu0
        %2205 = vmatprep.mubr.bf16.mxu0 0
        %2206 = vmatmul.mubr.bf16.gmra.mrb[0].mxu0 %v1106
        %v2207 = vpop.f32.mrb[0].mxu0
        %v2208 = vadd.f32 %v483, %v2207
        %v2209 = vpop.f32.mrb[0].mxu0
        %v2210 = vpop.f32.mrb[0].mxu0
        %v2211 = vadd.f32 %v483, %v2210
        %v2212 = vpop.f32.mrb[0].mxu0
        %2213 = vmatprep.mubr.bf16.mxu0 0
        %2214 = vmatmul.mubr.bf16.gmra.mrb[0].mxu0 %v1107
        %v2215 = vpop.f32.mrb[0].mxu0
        %v2216 = vadd.f32 %v483, %v2215
        %v2217 = vpop.f32.mrb[0].mxu0
        %v2218 = vpop.f32.mrb[0].mxu0
        %v2219 = vadd.f32 %v483, %v2218
        %v2220 = vpop.f32.mrb[0].mxu0
        %2221 = vmatprep.mubr.bf16.mxu0 0
        %2222 = vmatmul.mubr.bf16.gmra.mrb[0].mxu0 %v1108
        %v2223 = vpop.f32.mrb[0].mxu0
        %v2224 = vadd.f32 %v483, %v2223
        %v2225 = vpop.f32.mrb[0].mxu0
        %v2226 = vpop.f32.mrb[0].mxu0
        %v2227 = vadd.f32 %v483, %v2226
        %v2228 = vpop.f32.mrb[0].mxu0
        %2229 = vmatprep.mubr.bf16.mxu0 0
        %2230 = vmatmul.mubr.bf16.gmra.mrb[0].mxu0 %v1109
        %v2231 = vpop.f32.mrb[0].mxu0
        %v2232 = vadd.f32 %v483, %v2231
        %v2233 = vpop.f32.mrb[0].mxu0
        %v2234 = vpop.f32.mrb[0].mxu0
        %v2235 = vadd.f32 %v483, %v2234
        %v2236 = vpop.f32.mrb[0].mxu0
        %2237 = vmatprep.mubr.bf16.mxu0 0
        %2238 = vmatmul.mubr.bf16.gmra.mrb[0].mxu0 %v1110
        %v2239 = vpop.f32.mrb[0].mxu0
        %v2240 = vadd.f32 %v483, %v2239
        %v2241 = vpop.f32.mrb[0].mxu0
        %v2242 = vpop.f32.mrb[0].mxu0
        %v2243 = vadd.f32 %v483, %v2242
        %v2244 = vpop.f32.mrb[0].mxu0
        %2245 = vmatprep.mubr.bf16.mxu0 0
        %2246 = vmatmul.mubr.bf16.gmra.mrb[0].mxu0 %v1111
        %v2247 = vpop.f32.mrb[0].mxu0
        %v2248 = vadd.f32 %v483, %v2247
        %v2249 = vpop.f32.mrb[0].mxu0
        %v2250 = vpop.f32.mrb[0].mxu0
        %v2251 = vadd.f32 %v483, %v2250
        %v2252 = vpop.f32.mrb[0].mxu0
        %2253 = vmatprep.mubr.bf16.mxu0 0
        %2254 = vmatmul.mubr.bf16.gmra.mrb[0].mxu0 %v1112
        %v2255 = vpop.f32.mrb[0].mxu0
        %v2256 = vadd.f32 %v483, %v2255
        %v2257 = vpop.f32.mrb[0].mxu0
        %v2258 = vpop.f32.mrb[0].mxu0
        %v2259 = vadd.f32 %v483, %v2258
        %v2260 = vpop.f32.mrb[0].mxu0
        %2261 = vmatprep.mubr.bf16.mxu0 0
        %2262 = vmatmul.mubr.bf16.gmra.mrb[0].mxu0 %v1113
        %v2263 = vpop.f32.mrb[0].mxu0
        %v2264 = vadd.f32 %v483, %v2263
        %v2265 = vpop.f32.mrb[0].mxu0
        %v2266 = vpop.f32.mrb[0].mxu0
        %v2267 = vadd.f32 %v483, %v2266
        %v2268 = vpop.f32.mrb[0].mxu0
        %2269 = vmatprep.mubr.bf16.mxu0 0
        %2270 = vmatmul.mubr.bf16.gmra.mrb[0].mxu0 %v1114
        %v2271 = vpop.f32.mrb[0].mxu0
        %v2272 = vadd.f32 %v483, %v2271
        %v2273 = vpop.f32.mrb[0].mxu0
        %v2274 = vpop.f32.mrb[0].mxu0
        %v2275 = vadd.f32 %v483, %v2274
        %v2276 = vpop.f32.mrb[0].mxu0
        %2277 = vmatprep.mubr.bf16.mxu0 0
        %2278 = vmatmul.mubr.bf16.gmra.mrb[0].mxu0 %v1115
        %v2279 = vpop.f32.mrb[0].mxu0
        %v2280 = vadd.f32 %v483, %v2279
        %v2281 = vpop.f32.mrb[0].mxu0
        %v2282 = vpop.f32.mrb[0].mxu0
        %v2283 = vadd.f32 %v483, %v2282
        %v2284 = vpop.f32.mrb[0].mxu0
        %2285 = vmatprep.mubr.bf16.mxu0 0
        %2286 = vmatmul.mubr.bf16.gmra.mrb[0].mxu0 %v1116
        %v2287 = vpop.f32.mrb[0].mxu0
        %v2288 = vadd.f32 %v483, %v2287
        %v2289 = vpop.f32.mrb[0].mxu0
        %v2290 = vpop.f32.mrb[0].mxu0
        %v2291 = vadd.f32 %v483, %v2290
        %v2292 = vpop.f32.mrb[0].mxu0
        %2293 = vmatprep.mubr.bf16.mxu0 0
        %2294 = vmatmul.mubr.bf16.gmra.mrb[0].mxu0 %v1117
        %v2295 = vpop.f32.mrb[0].mxu0
        %v2296 = vadd.f32 %v483, %v2295
        %v2297 = vpop.f32.mrb[0].mxu0
        %v2298 = vpop.f32.mrb[0].mxu0
        %v2299 = vadd.f32 %v483, %v2298
        %v2300 = vpop.f32.mrb[0].mxu0
        %2301 = vmatprep.mubr.bf16.mxu0 0
        %2302 = vmatmul.mubr.bf16.gmra.mrb[0].mxu0 %v1118
        %v2303 = vpop.f32.mrb[0].mxu0
        %v2304 = vadd.f32 %v483, %v2303
        %v2305 = vpop.f32.mrb[0].mxu0
        %v2306 = vpop.f32.mrb[0].mxu0
        %v2307 = vadd.f32 %v483, %v2306
        %v2308 = vpop.f32.mrb[0].mxu0
        %2309 = vmatprep.mubr.bf16.mxu0 0
        %2310 = vmatmul.mubr.bf16.gmra.mrb[0].mxu0 %v1119
        %v2311 = vpop.f32.mrb[0].mxu0
        %v2312 = vadd.f32 %v483, %v2311
        %v2313 = vpop.f32.mrb[0].mxu0
        %v2314 = vpop.f32.mrb[0].mxu0
        %v2315 = vadd.f32 %v483, %v2314
        %v2316 = vpop.f32.mrb[0].mxu0
        %2317 = vmatprep.mubr.bf16.mxu0 0
        %2318 = vmatmul.mubr.bf16.gmra.mrb[0].mxu0 %v1120
        %v2319 = vpop.f32.mrb[0].mxu0
        %v2320 = vadd.f32 %v483, %v2319
        %v2321 = vpop.f32.mrb[0].mxu0
        %v2322 = vpop.f32.mrb[0].mxu0
        %v2323 = vadd.f32 %v483, %v2322
        %v2324 = vpop.f32.mrb[0].mxu0
        %2325 = vmatprep.mubr.bf16.mxu0 0
        %2326 = vmatmul.mubr.bf16.gmra.mrb[0].mxu0 %v1121
        %v2327 = vpop.f32.mrb[0].mxu0
        %v2328 = vadd.f32 %v483, %v2327
        %v2329 = vpop.f32.mrb[0].mxu0
        %v2330 = vpop.f32.mrb[0].mxu0
        %v2331 = vadd.f32 %v483, %v2330
        %v2332 = vpop.f32.mrb[0].mxu0
        %2333 = vmatprep.mubr.bf16.mxu0 0
        %2334 = vmatmul.mubr.bf16.gmra.mrb[0].mxu0 %v1122
        %v2335 = vpop.f32.mrb[0].mxu0
        %v2336 = vadd.f32 %v483, %v2335
        %v2337 = vpop.f32.mrb[0].mxu0
        %v2338 = vpop.f32.mrb[0].mxu0
        %v2339 = vadd.f32 %v483, %v2338
        %v2340 = vpop.f32.mrb[0].mxu0
        %2341 = vmatprep.mubr.bf16.mxu0 0
        %2342 = vmatmul.mubr.bf16.gmra.mrb[0].mxu0 %v1123
        %v2343 = vpop.f32.mrb[0].mxu0
        %v2344 = vadd.f32 %v483, %v2343
        %v2345 = vpop.f32.mrb[0].mxu0
        %v2346 = vpop.f32.mrb[0].mxu0
        %v2347 = vadd.f32 %v483, %v2346
        %v2348 = vpop.f32.mrb[0].mxu0
        %2349 = vmatprep.mubr.bf16.mxu0 0
        %2350 = vmatmul.mubr.bf16.gmra.mrb[0].mxu0 %v1124
        %v2351 = vpop.f32.mrb[0].mxu0
        %v2352 = vadd.f32 %v483, %v2351
        %v2353 = vpop.f32.mrb[0].mxu0
        %v2354 = vpop.f32.mrb[0].mxu0
        %v2355 = vadd.f32 %v483, %v2354
        %v2356 = vpop.f32.mrb[0].mxu0
        %2357 = vdwg.mxu0
        %v2358 = vmax.f32 %v1336, 0.0
        %v2359 = vmax.f32 %v1339, 0.0
        %v2360 = vmax.f32 %v1344, 0.0
        %v2361 = vmax.f32 %v1347, 0.0
        %v2362 = vmax.f32 %v1352, 0.0
        %v2363 = vmax.f32 %v1355, 0.0
        %v2364 = vmax.f32 %v1360, 0.0
        %v2365 = vmax.f32 %v1363, 0.0
        %v2366 = vmax.f32 %v1368, 0.0
        %v2367 = vmax.f32 %v1371, 0.0
        %v2368 = vmax.f32 %v1376, 0.0
        %v2369 = vmax.f32 %v1379, 0.0
        %v2370 = vmax.f32 %v1384, 0.0
        %v2371 = vmax.f32 %v1387, 0.0
        %v2372 = vmax.f32 %v1392, 0.0
        %v2373 = vmax.f32 %v1395, 0.0
        %v2374 = vmax.f32 %v1400, 0.0
        %v2375 = vmax.f32 %v1403, 0.0
        %v2376 = vmax.f32 %v1408, 0.0
        %v2377 = vmax.f32 %v1411, 0.0
        %v2378 = vmax.f32 %v1416, 0.0
        %v2379 = vmax.f32 %v1419, 0.0
        %v2380 = vmax.f32 %v1424, 0.0
        %v2381 = vmax.f32 %v1427, 0.0
        %v2382 = vmax.f32 %v1432, 0.0
        %v2383 = vmax.f32 %v1435, 0.0
        %v2384 = vmax.f32 %v1440, 0.0
        %v2385 = vmax.f32 %v1443, 0.0
        %v2386 = vmax.f32 %v1448, 0.0
        %v2387 = vmax.f32 %v1451, 0.0
        %v2388 = vmax.f32 %v1456, 0.0
        %v2389 = vmax.f32 %v1459, 0.0
        %v2390 = vmax.f32 %v1464, 0.0
        %v2391 = vmax.f32 %v1467, 0.0
        %v2392 = vmax.f32 %v1472, 0.0
        %v2393 = vmax.f32 %v1475, 0.0
        %v2394 = vmax.f32 %v1480, 0.0
        %v2395 = vmax.f32 %v1483, 0.0
        %v2396 = vmax.f32 %v1488, 0.0
        %v2397 = vmax.f32 %v1491, 0.0
        %v2398 = vmax.f32 %v1496, 0.0
        %v2399 = vmax.f32 %v1499, 0.0
        %v2400 = vmax.f32 %v1504, 0.0
        %v2401 = vmax.f32 %v1507, 0.0
        %v2402 = vmax.f32 %v1512, 0.0
        %v2403 = vmax.f32 %v1515, 0.0
        %v2404 = vmax.f32 %v1520, 0.0
        %v2405 = vmax.f32 %v1523, 0.0
        %v2406 = vmax.f32 %v1528, 0.0
        %v2407 = vmax.f32 %v1531, 0.0
        %v2408 = vmax.f32 %v1536, 0.0
        %v2409 = vmax.f32 %v1539, 0.0
        %v2410 = vmax.f32 %v1544, 0.0
        %v2411 = vmax.f32 %v1547, 0.0
        %v2412 = vmax.f32 %v1552, 0.0
        %v2413 = vmax.f32 %v1555, 0.0
        %v2414 = vmax.f32 %v1560, 0.0
        %v2415 = vmax.f32 %v1563, 0.0
        %v2416 = vmax.f32 %v1568, 0.0
        %v2417 = vmax.f32 %v1571, 0.0
        %v2418 = vmax.f32 %v1576, 0.0
        %v2419 = vmax.f32 %v1579, 0.0
        %v2420 = vmax.f32 %v1584, 0.0
        %v2421 = vmax.f32 %v1587, 0.0
        %v2422 = vmax.f32 %v1592, 0.0
        %v2423 = vmax.f32 %v1595, 0.0
        %v2424 = vmax.f32 %v1600, 0.0
        %v2425 = vmax.f32 %v1603, 0.0
        %v2426 = vmax.f32 %v1608, 0.0
        %v2427 = vmax.f32 %v1611, 0.0
        %v2428 = vmax.f32 %v1616, 0.0
        %v2429 = vmax.f32 %v1619, 0.0
        %v2430 = vmax.f32 %v1624, 0.0
        %v2431 = vmax.f32 %v1627, 0.0
        %v2432 = vmax.f32 %v1632, 0.0
        %v2433 = vmax.f32 %v1635, 0.0
        %v2434 = vmax.f32 %v1640, 0.0
        %v2435 = vmax.f32 %v1643, 0.0
        %v2436 = vmax.f32 %v1648, 0.0
        %v2437 = vmax.f32 %v1651, 0.0
        %v2438 = vmax.f32 %v1656, 0.0
        %v2439 = vmax.f32 %v1659, 0.0
        %v2440 = vmax.f32 %v1664, 0.0
        %v2441 = vmax.f32 %v1667, 0.0
        %v2442 = vmax.f32 %v1672, 0.0
        %v2443 = vmax.f32 %v1675, 0.0
        %v2444 = vmax.f32 %v1680, 0.0
        %v2445 = vmax.f32 %v1683, 0.0
        %v2446 = vmax.f32 %v1688, 0.0
        %v2447 = vmax.f32 %v1691, 0.0
        %v2448 = vmax.f32 %v1696, 0.0
        %v2449 = vmax.f32 %v1699, 0.0
        %v2450 = vmax.f32 %v1704, 0.0
        %v2451 = vmax.f32 %v1707, 0.0
        %v2452 = vmax.f32 %v1712, 0.0
        %v2453 = vmax.f32 %v1715, 0.0
        %v2454 = vmax.f32 %v1720, 0.0
        %v2455 = vmax.f32 %v1723, 0.0
        %v2456 = vmax.f32 %v1728, 0.0
        %v2457 = vmax.f32 %v1731, 0.0
        %v2458 = vmax.f32 %v1736, 0.0
        %v2459 = vmax.f32 %v1739, 0.0
        %v2460 = vmax.f32 %v1744, 0.0
        %v2461 = vmax.f32 %v1747, 0.0
        %v2462 = vmax.f32 %v1752, 0.0
        %v2463 = vmax.f32 %v1755, 0.0
        %v2464 = vmax.f32 %v1760, 0.0
        %v2465 = vmax.f32 %v1763, 0.0
        %v2466 = vmax.f32 %v1768, 0.0
        %v2467 = vmax.f32 %v1771, 0.0
        %v2468 = vmax.f32 %v1776, 0.0
        %v2469 = vmax.f32 %v1779, 0.0
        %v2470 = vmax.f32 %v1784, 0.0
        %v2471 = vmax.f32 %v1787, 0.0
        %v2472 = vmax.f32 %v1792, 0.0
        %v2473 = vmax.f32 %v1795, 0.0
        %v2474 = vmax.f32 %v1800, 0.0
        %v2475 = vmax.f32 %v1803, 0.0
        %v2476 = vmax.f32 %v1808, 0.0
        %v2477 = vmax.f32 %v1811, 0.0
        %v2478 = vmax.f32 %v1816, 0.0
        %v2479 = vmax.f32 %v1819, 0.0
        %v2480 = vmax.f32 %v1824, 0.0
        %v2481 = vmax.f32 %v1827, 0.0
        %v2482 = vmax.f32 %v1832, 0.0
        %v2483 = vmax.f32 %v1835, 0.0
        %v2484 = vmax.f32 %v1840, 0.0
        %v2485 = vmax.f32 %v1843, 0.0
        %v2486 = vmax.f32 %v1848, 0.0
        %v2487 = vmax.f32 %v1851, 0.0
        %v2488 = vmax.f32 %v1856, 0.0
        %v2489 = vmax.f32 %v1859, 0.0
        %v2490 = vmax.f32 %v1864, 0.0
        %v2491 = vmax.f32 %v1867, 0.0
        %v2492 = vmax.f32 %v1872, 0.0
        %v2493 = vmax.f32 %v1875, 0.0
        %v2494 = vmax.f32 %v1880, 0.0
        %v2495 = vmax.f32 %v1883, 0.0
        %v2496 = vmax.f32 %v1888, 0.0
        %v2497 = vmax.f32 %v1891, 0.0
        %v2498 = vmax.f32 %v1896, 0.0
        %v2499 = vmax.f32 %v1899, 0.0
        %v2500 = vmax.f32 %v1904, 0.0
        %v2501 = vmax.f32 %v1907, 0.0
        %v2502 = vmax.f32 %v1912, 0.0
        %v2503 = vmax.f32 %v1915, 0.0
        %v2504 = vmax.f32 %v1920, 0.0
        %v2505 = vmax.f32 %v1923, 0.0
        %v2506 = vmax.f32 %v1928, 0.0
        %v2507 = vmax.f32 %v1931, 0.0
        %v2508 = vmax.f32 %v1936, 0.0
        %v2509 = vmax.f32 %v1939, 0.0
        %v2510 = vmax.f32 %v1944, 0.0
        %v2511 = vmax.f32 %v1947, 0.0
        %v2512 = vmax.f32 %v1952, 0.0
        %v2513 = vmax.f32 %v1955, 0.0
        %v2514 = vmax.f32 %v1960, 0.0
        %v2515 = vmax.f32 %v1963, 0.0
        %v2516 = vmax.f32 %v1968, 0.0
        %v2517 = vmax.f32 %v1971, 0.0
        %v2518 = vmax.f32 %v1976, 0.0
        %v2519 = vmax.f32 %v1979, 0.0
        %v2520 = vmax.f32 %v1984, 0.0
        %v2521 = vmax.f32 %v1987, 0.0
        %v2522 = vmax.f32 %v1992, 0.0
        %v2523 = vmax.f32 %v1995, 0.0
        %v2524 = vmax.f32 %v2000, 0.0
        %v2525 = vmax.f32 %v2003, 0.0
        %v2526 = vmax.f32 %v2008, 0.0
        %v2527 = vmax.f32 %v2011, 0.0
        %v2528 = vmax.f32 %v2016, 0.0
        %v2529 = vmax.f32 %v2019, 0.0
        %v2530 = vmax.f32 %v2024, 0.0
        %v2531 = vmax.f32 %v2027, 0.0
        %v2532 = vmax.f32 %v2032, 0.0
        %v2533 = vmax.f32 %v2035, 0.0
        %v2534 = vmax.f32 %v2040, 0.0
        %v2535 = vmax.f32 %v2043, 0.0
        %v2536 = vmax.f32 %v2048, 0.0
        %v2537 = vmax.f32 %v2051, 0.0
        %v2538 = vmax.f32 %v2056, 0.0
        %v2539 = vmax.f32 %v2059, 0.0
        %v2540 = vmax.f32 %v2064, 0.0
        %v2541 = vmax.f32 %v2067, 0.0
        %v2542 = vmax.f32 %v2072, 0.0
        %v2543 = vmax.f32 %v2075, 0.0
        %v2544 = vmax.f32 %v2080, 0.0
        %v2545 = vmax.f32 %v2083, 0.0
        %v2546 = vmax.f32 %v2088, 0.0
        %v2547 = vmax.f32 %v2091, 0.0
        %v2548 = vmax.f32 %v2096, 0.0
        %v2549 = vmax.f32 %v2099, 0.0
        %v2550 = vmax.f32 %v2104, 0.0
        %v2551 = vmax.f32 %v2107, 0.0
        %v2552 = vmax.f32 %v2112, 0.0
        %v2553 = vmax.f32 %v2115, 0.0
        %v2554 = vmax.f32 %v2120, 0.0
        %v2555 = vmax.f32 %v2123, 0.0
        %v2556 = vmax.f32 %v2128, 0.0
        %v2557 = vmax.f32 %v2131, 0.0
        %v2558 = vmax.f32 %v2136, 0.0
        %v2559 = vmax.f32 %v2139, 0.0
        %v2560 = vmax.f32 %v2144, 0.0
        %v2561 = vmax.f32 %v2147, 0.0
        %v2562 = vmax.f32 %v2152, 0.0
        %v2563 = vmax.f32 %v2155, 0.0
        %v2564 = vmax.f32 %v2160, 0.0
        %v2565 = vmax.f32 %v2163, 0.0
        %v2566 = vmax.f32 %v2168, 0.0
        %v2567 = vmax.f32 %v2171, 0.0
        %v2568 = vmax.f32 %v2176, 0.0
        %v2569 = vmax.f32 %v2179, 0.0
        %v2570 = vmax.f32 %v2184, 0.0
        %v2571 = vmax.f32 %v2187, 0.0
        %v2572 = vmax.f32 %v2192, 0.0
        %v2573 = vmax.f32 %v2195, 0.0
        %v2574 = vmax.f32 %v2200, 0.0
        %v2575 = vmax.f32 %v2203, 0.0
        %v2576 = vmax.f32 %v2208, 0.0
        %v2577 = vmax.f32 %v2211, 0.0
        %v2578 = vmax.f32 %v2216, 0.0
        %v2579 = vmax.f32 %v2219, 0.0
        %v2580 = vmax.f32 %v2224, 0.0
        %v2581 = vmax.f32 %v2227, 0.0
        %v2582 = vmax.f32 %v2232, 0.0
        %v2583 = vmax.f32 %v2235, 0.0
        %v2584 = vmax.f32 %v2240, 0.0
        %v2585 = vmax.f32 %v2243, 0.0
        %v2586 = vmax.f32 %v2248, 0.0
        %v2587 = vmax.f32 %v2251, 0.0
        %v2588 = vmax.f32 %v2256, 0.0
        %v2589 = vmax.f32 %v2259, 0.0
        %v2590 = vmax.f32 %v2264, 0.0
        %v2591 = vmax.f32 %v2267, 0.0
        %v2592 = vmax.f32 %v2272, 0.0
        %v2593 = vmax.f32 %v2275, 0.0
        %v2594 = vmax.f32 %v2280, 0.0
        %v2595 = vmax.f32 %v2283, 0.0
        %v2596 = vmax.f32 %v2288, 0.0
        %v2597 = vmax.f32 %v2291, 0.0
        %v2598 = vmax.f32 %v2296, 0.0
        %v2599 = vmax.f32 %v2299, 0.0
        %v2600 = vmax.f32 %v2304, 0.0
        %v2601 = vmax.f32 %v2307, 0.0
        %v2602 = vmax.f32 %v2312, 0.0
        %v2603 = vmax.f32 %v2315, 0.0
        %v2604 = vmax.f32 %v2320, 0.0
        %v2605 = vmax.f32 %v2323, 0.0
        %v2606 = vmax.f32 %v2328, 0.0
        %v2607 = vmax.f32 %v2331, 0.0
        %v2608 = vmax.f32 %v2336, 0.0
        %v2609 = vmax.f32 %v2339, 0.0
        %v2610 = vmax.f32 %v2344, 0.0
        %v2611 = vmax.f32 %v2347, 0.0
        %v2612 = vmax.f32 %v2352, 0.0
        %v2613 = vmax.f32 %v2355, 0.0
        %v2614 = vadd.f32 %v2358, %v2359
        %v2615 = vadd.f32 %v2614, %v2360
        %v2616 = vadd.f32 %v2615, %v2361
        %v2617 = vadd.f32 %v2616, %v2362
        %v2618 = vadd.f32 %v2617, %v2363
        %v2619 = vadd.f32 %v2618, %v2364
        %v2620 = vadd.f32 %v2619, %v2365
        %v2621 = vadd.f32 %v2620, %v2366
        %v2622 = vadd.f32 %v2621, %v2367
        %v2623 = vadd.f32 %v2622, %v2368
        %v2624 = vadd.f32 %v2623, %v2369
        %v2625 = vadd.f32 %v2624, %v2370
        %v2626 = vadd.f32 %v2625, %v2371
        %v2627 = vadd.f32 %v2626, %v2372
        %v2628 = vadd.f32 %v2627, %v2373
        %v2629 = vadd.f32 %v2628, %v2374
        %v2630 = vadd.f32 %v2629, %v2375
        %v2631 = vadd.f32 %v2630, %v2376
        %v2632 = vadd.f32 %v2631, %v2377
        %v2633 = vadd.f32 %v2632, %v2378
        %v2634 = vadd.f32 %v2633, %v2379
        %v2635 = vadd.f32 %v2634, %v2380
        %v2636 = vadd.f32 %v2635, %v2381
        %v2637 = vadd.f32 %v2636, %v2382
        %v2638 = vadd.f32 %v2637, %v2383
        %v2639 = vadd.f32 %v2638, %v2384
        %v2640 = vadd.f32 %v2639, %v2385
        %v2641 = vadd.f32 %v2640, %v2386
        %v2642 = vadd.f32 %v2641, %v2387
        %v2643 = vadd.f32 %v2642, %v2388
        %v2644 = vadd.f32 %v2643, %v2389
        %v2645 = vrot.slane %v2644, 4
        %v2646 = vadd.f32 %v2644, %v2645
        %v2647 = vrot.slane %v2646, 2
        %v2648 = vadd.f32 %v2646, %v2647
        %v2649 = vrot.slane %v2648, 1
        %v2650 = vadd.f32 %v2648, %v2649
        %v2651 = vadd.f32 %v2390, %v2391
        %v2652 = vadd.f32 %v2651, %v2392
        %v2653 = vadd.f32 %v2652, %v2393
        %v2654 = vadd.f32 %v2653, %v2394
        %v2655 = vadd.f32 %v2654, %v2395
        %v2656 = vadd.f32 %v2655, %v2396
        %v2657 = vadd.f32 %v2656, %v2397
        %v2658 = vadd.f32 %v2657, %v2398
        %v2659 = vadd.f32 %v2658, %v2399
        %v2660 = vadd.f32 %v2659, %v2400
        %v2661 = vadd.f32 %v2660, %v2401
        %v2662 = vadd.f32 %v2661, %v2402
        %v2663 = vadd.f32 %v2662, %v2403
        %v2664 = vadd.f32 %v2663, %v2404
        %v2665 = vadd.f32 %v2664, %v2405
        %v2666 = vadd.f32 %v2665, %v2406
        %v2667 = vadd.f32 %v2666, %v2407
        %v2668 = vadd.f32 %v2667, %v2408
        %v2669 = vadd.f32 %v2668, %v2409
        %v2670 = vadd.f32 %v2669, %v2410
        %v2671 = vadd.f32 %v2670, %v2411
        %v2672 = vadd.f32 %v2671, %v2412
        %v2673 = vadd.f32 %v2672, %v2413
        %v2674 = vadd.f32 %v2673, %v2414
        %v2675 = vadd.f32 %v2674, %v2415
        %v2676 = vadd.f32 %v2675, %v2416
        %v2677 = vadd.f32 %v2676, %v2417
        %v2678 = vadd.f32 %v2677, %v2418
        %v2679 = vadd.f32 %v2678, %v2419
        %v2680 = vadd.f32 %v2679, %v2420
        %v2681 = vadd.f32 %v2680, %v2421
        %v2682 = vrot.slane %v2681, 4
        %v2683 = vadd.f32 %v2681, %v2682
        %v2684 = vrot.slane %v2683, 2
        %v2685 = vadd.f32 %v2683, %v2684
        %v2686 = vrot.slane %v2685, 1
        %v2687 = vadd.f32 %v2685, %v2686
        %v2688 = vadd.f32 %v2422, %v2423
        %v2689 = vadd.f32 %v2688, %v2424
        %v2690 = vadd.f32 %v2689, %v2425
        %v2691 = vadd.f32 %v2690, %v2426
        %v2692 = vadd.f32 %v2691, %v2427
        %v2693 = vadd.f32 %v2692, %v2428
        %v2694 = vadd.f32 %v2693, %v2429
        %v2695 = vadd.f32 %v2694, %v2430
        %v2696 = vadd.f32 %v2695, %v2431
        %v2697 = vadd.f32 %v2696, %v2432
        %v2698 = vadd.f32 %v2697, %v2433
        %v2699 = vadd.f32 %v2698, %v2434
        %v2700 = vadd.f32 %v2699, %v2435
        %v2701 = vadd.f32 %v2700, %v2436
        %v2702 = vadd.f32 %v2701, %v2437
        %v2703 = vadd.f32 %v2702, %v2438
        %v2704 = vadd.f32 %v2703, %v2439
        %v2705 = vadd.f32 %v2704, %v2440
        %v2706 = vadd.f32 %v2705, %v2441
        %v2707 = vadd.f32 %v2706, %v2442
        %v2708 = vadd.f32 %v2707, %v2443
        %v2709 = vadd.f32 %v2708, %v2444
        %v2710 = vadd.f32 %v2709, %v2445
        %v2711 = vadd.f32 %v2710, %v2446
        %v2712 = vadd.f32 %v2711, %v2447
        %v2713 = vadd.f32 %v2712, %v2448
        %v2714 = vadd.f32 %v2713, %v2449
        %v2715 = vadd.f32 %v2714, %v2450
        %v2716 = vadd.f32 %v2715, %v2451
        %v2717 = vadd.f32 %v2716, %v2452
        %v2718 = vadd.f32 %v2717, %v2453
        %v2719 = vrot.slane %v2718, 4
        %v2720 = vadd.f32 %v2718, %v2719
        %v2721 = vrot.slane %v2720, 2
        %v2722 = vadd.f32 %v2720, %v2721
        %v2723 = vrot.slane %v2722, 1
        %v2724 = vadd.f32 %v2722, %v2723
        %v2725 = vadd.f32 %v2454, %v2455
        %v2726 = vadd.f32 %v2725, %v2456
        %v2727 = vadd.f32 %v2726, %v2457
        %v2728 = vadd.f32 %v2727, %v2458
        %v2729 = vadd.f32 %v2728, %v2459
        %v2730 = vadd.f32 %v2729, %v2460
        %v2731 = vadd.f32 %v2730, %v2461
        %v2732 = vadd.f32 %v2731, %v2462
        %v2733 = vadd.f32 %v2732, %v2463
        %v2734 = vadd.f32 %v2733, %v2464
        %v2735 = vadd.f32 %v2734, %v2465
        %v2736 = vadd.f32 %v2735, %v2466
        %v2737 = vadd.f32 %v2736, %v2467
        %v2738 = vadd.f32 %v2737, %v2468
        %v2739 = vadd.f32 %v2738, %v2469
        %v2740 = vadd.f32 %v2739, %v2470
        %v2741 = vadd.f32 %v2740, %v2471
        %v2742 = vadd.f32 %v2741, %v2472
        %v2743 = vadd.f32 %v2742, %v2473
        %v2744 = vadd.f32 %v2743, %v2474
        %v2745 = vadd.f32 %v2744, %v2475
        %v2746 = vadd.f32 %v2745, %v2476
        %v2747 = vadd.f32 %v2746, %v2477
        %v2748 = vadd.f32 %v2747, %v2478
        %v2749 = vadd.f32 %v2748, %v2479
        %v2750 = vadd.f32 %v2749, %v2480
        %v2751 = vadd.f32 %v2750, %v2481
        %v2752 = vadd.f32 %v2751, %v2482
        %v2753 = vadd.f32 %v2752, %v2483
        %v2754 = vadd.f32 %v2753, %v2484
        %v2755 = vadd.f32 %v2754, %v2485
        %v2756 = vrot.slane %v2755, 4
        %v2757 = vadd.f32 %v2755, %v2756
        %v2758 = vrot.slane %v2757, 2
        %v2759 = vadd.f32 %v2757, %v2758
        %v2760 = vrot.slane %v2759, 1
        %v2761 = vadd.f32 %v2759, %v2760
        %v2762 = vadd.f32 %v2486, %v2487
        %v2763 = vadd.f32 %v2762, %v2488
        %v2764 = vadd.f32 %v2763, %v2489
        %v2765 = vadd.f32 %v2764, %v2490
        %v2766 = vadd.f32 %v2765, %v2491
        %v2767 = vadd.f32 %v2766, %v2492
        %v2768 = vadd.f32 %v2767, %v2493
        %v2769 = vadd.f32 %v2768, %v2494
        %v2770 = vadd.f32 %v2769, %v2495
        %v2771 = vadd.f32 %v2770, %v2496
        %v2772 = vadd.f32 %v2771, %v2497
        %v2773 = vadd.f32 %v2772, %v2498
        %v2774 = vadd.f32 %v2773, %v2499
        %v2775 = vadd.f32 %v2774, %v2500
        %v2776 = vadd.f32 %v2775, %v2501
        %v2777 = vadd.f32 %v2776, %v2502
        %v2778 = vadd.f32 %v2777, %v2503
        %v2779 = vadd.f32 %v2778, %v2504
        %v2780 = vadd.f32 %v2779, %v2505
        %v2781 = vadd.f32 %v2780, %v2506
        %v2782 = vadd.f32 %v2781, %v2507
        %v2783 = vadd.f32 %v2782, %v2508
        %v2784 = vadd.f32 %v2783, %v2509
        %v2785 = vadd.f32 %v2784, %v2510
        %v2786 = vadd.f32 %v2785, %v2511
        %v2787 = vadd.f32 %v2786, %v2512
        %v2788 = vadd.f32 %v2787, %v2513
        %v2789 = vadd.f32 %v2788, %v2514
        %v2790 = vadd.f32 %v2789, %v2515
        %v2791 = vadd.f32 %v2790, %v2516
        %v2792 = vadd.f32 %v2791, %v2517
        %v2793 = vrot.slane %v2792, 4
        %v2794 = vadd.f32 %v2792, %v2793
        %v2795 = vrot.slane %v2794, 2
        %v2796 = vadd.f32 %v2794, %v2795
        %v2797 = vrot.slane %v2796, 1
        %v2798 = vadd.f32 %v2796, %v2797
        %v2799 = vadd.f32 %v2518, %v2519
        %v2800 = vadd.f32 %v2799, %v2520
        %v2801 = vadd.f32 %v2800, %v2521
        %v2802 = vadd.f32 %v2801, %v2522
        %v2803 = vadd.f32 %v2802, %v2523
        %v2804 = vadd.f32 %v2803, %v2524
        %v2805 = vadd.f32 %v2804, %v2525
        %v2806 = vadd.f32 %v2805, %v2526
        %v2807 = vadd.f32 %v2806, %v2527
        %v2808 = vadd.f32 %v2807, %v2528
        %v2809 = vadd.f32 %v2808, %v2529
        %v2810 = vadd.f32 %v2809, %v2530
        %v2811 = vadd.f32 %v2810, %v2531
        %v2812 = vadd.f32 %v2811, %v2532
        %v2813 = vadd.f32 %v2812, %v2533
        %v2814 = vadd.f32 %v2813, %v2534
        %v2815 = vadd.f32 %v2814, %v2535
        %v2816 = vadd.f32 %v2815, %v2536
        %v2817 = vadd.f32 %v2816, %v2537
        %v2818 = vadd.f32 %v2817, %v2538
        %v2819 = vadd.f32 %v2818, %v2539
        %v2820 = vadd.f32 %v2819, %v2540
        %v2821 = vadd.f32 %v2820, %v2541
        %v2822 = vadd.f32 %v2821, %v2542
        %v2823 = vadd.f32 %v2822, %v2543
        %v2824 = vadd.f32 %v2823, %v2544
        %v2825 = vadd.f32 %v2824, %v2545
        %v2826 = vadd.f32 %v2825, %v2546
        %v2827 = vadd.f32 %v2826, %v2547
        %v2828 = vadd.f32 %v2827, %v2548
        %v2829 = vadd.f32 %v2828, %v2549
        %v2830 = vrot.slane %v2829, 4
        %v2831 = vadd.f32 %v2829, %v2830
        %v2832 = vrot.slane %v2831, 2
        %v2833 = vadd.f32 %v2831, %v2832
        %v2834 = vrot.slane %v2833, 1
        %v2835 = vadd.f32 %v2833, %v2834
        %v2836 = vadd.f32 %v2550, %v2551
        %v2837 = vadd.f32 %v2836, %v2552
        %v2838 = vadd.f32 %v2837, %v2553
        %v2839 = vadd.f32 %v2838, %v2554
        %v2840 = vadd.f32 %v2839, %v2555
        %v2841 = vadd.f32 %v2840, %v2556
        %v2842 = vadd.f32 %v2841, %v2557
        %v2843 = vadd.f32 %v2842, %v2558
        %v2844 = vadd.f32 %v2843, %v2559
        %v2845 = vadd.f32 %v2844, %v2560
        %v2846 = vadd.f32 %v2845, %v2561
        %v2847 = vadd.f32 %v2846, %v2562
        %v2848 = vadd.f32 %v2847, %v2563
        %v2849 = vadd.f32 %v2848, %v2564
        %v2850 = vadd.f32 %v2849, %v2565
        %v2851 = vadd.f32 %v2850, %v2566
        %v2852 = vadd.f32 %v2851, %v2567
        %v2853 = vadd.f32 %v2852, %v2568
        %v2854 = vadd.f32 %v2853, %v2569
        %v2855 = vadd.f32 %v2854, %v2570
        %v2856 = vadd.f32 %v2855, %v2571
        %v2857 = vadd.f32 %v2856, %v2572
        %v2858 = vadd.f32 %v2857, %v2573
        %v2859 = vadd.f32 %v2858, %v2574
        %v2860 = vadd.f32 %v2859, %v2575
        %v2861 = vadd.f32 %v2860, %v2576
        %v2862 = vadd.f32 %v2861, %v2577
        %v2863 = vadd.f32 %v2862, %v2578
        %v2864 = vadd.f32 %v2863, %v2579
        %v2865 = vadd.f32 %v2864, %v2580
        %v2866 = vadd.f32 %v2865, %v2581
        %v2867 = vrot.slane %v2866, 4
        %v2868 = vadd.f32 %v2866, %v2867
        %v2869 = vrot.slane %v2868, 2
        %v2870 = vadd.f32 %v2868, %v2869
        %v2871 = vrot.slane %v2870, 1
        %v2872 = vadd.f32 %v2870, %v2871
        %v2873 = vadd.f32 %v2582, %v2583
        %v2874 = vadd.f32 %v2873, %v2584
        %v2875 = vadd.f32 %v2874, %v2585
        %v2876 = vadd.f32 %v2875, %v2586
        %v2877 = vadd.f32 %v2876, %v2587
        %v2878 = vadd.f32 %v2877, %v2588
        %v2879 = vadd.f32 %v2878, %v2589
        %v2880 = vadd.f32 %v2879, %v2590
        %v2881 = vadd.f32 %v2880, %v2591
        %v2882 = vadd.f32 %v2881, %v2592
        %v2883 = vadd.f32 %v2882, %v2593
        %v2884 = vadd.f32 %v2883, %v2594
        %v2885 = vadd.f32 %v2884, %v2595
        %v2886 = vadd.f32 %v2885, %v2596
        %v2887 = vadd.f32 %v2886, %v2597
        %v2888 = vadd.f32 %v2887, %v2598
        %v2889 = vadd.f32 %v2888, %v2599
        %v2890 = vadd.f32 %v2889, %v2600
        %v2891 = vadd.f32 %v2890, %v2601
        %v2892 = vadd.f32 %v2891, %v2602
        %v2893 = vadd.f32 %v2892, %v2603
        %v2894 = vadd.f32 %v2893, %v2604
        %v2895 = vadd.f32 %v2894, %v2605
        %v2896 = vadd.f32 %v2895, %v2606
        %v2897 = vadd.f32 %v2896, %v2607
        %v2898 = vadd.f32 %v2897, %v2608
        %v2899 = vadd.f32 %v2898, %v2609
        %v2900 = vadd.f32 %v2899, %v2610
        %v2901 = vadd.f32 %v2900, %v2611
        %v2902 = vadd.f32 %v2901, %v2612
        %v2903 = vadd.f32 %v2902, %v2613
        %v2904 = vrot.slane %v2903, 4
        %v2905 = vadd.f32 %v2903, %v2904
        %v2906 = vrot.slane %v2905, 2
        %v2907 = vadd.f32 %v2905, %v2906
        %v2908 = vrot.slane %v2907, 1
        %v2909 = vadd.f32 %v2907, %v2908
        %v2910 = vrcp.pop 256.0
        %v2911 = vmul.f32 %v2650, %v2910
        %v2912 = vmul.f32 %v2687, %v2910
        %v2913 = vmul.f32 %v2724, %v2910
        %v2914 = vmul.f32 %v2761, %v2910
        %v2915 = vmul.f32 %v2798, %v2910
        %v2916 = vmul.f32 %v2835, %v2910
        %v2917 = vmul.f32 %v2872, %v2910
        %v2918 = vmul.f32 %v2909, %v2910
        %vm2927 = vcmask 1041409
        %v2928 = vsel %vm2927, %v2912, %v2911
        %vm2929 = vcmask 1042434
        %v2930 = vsel %vm2929, %v2913, %v2928
        %vm2931 = vcmask 1043459
        %v2932 = vsel %vm2931, %v2914, %v2930
        %vm2933 = vcmask 1044484
        %v2934 = vsel %vm2933, %v2915, %v2932
        %vm2935 = vcmask 1045509
        %v2936 = vsel %vm2935, %v2916, %v2934
        %vm2937 = vcmask 1046534
        %v2938 = vsel %vm2937, %v2917, %v2936
        %vm2939 = vcmask 1047559
        %v2940 = vsel %vm2939, %v2918, %v2938
        %2942 = vst [vmem:[%s203] sm:$0xff] %v2940
        %s2943 = sand.u32 %s97, 1
        %s2944 = scalar_lea.sflag [#allocation4], %s2943
        %s2945 = sand.u32 %s97, 1
        %s2946 = smul.addr %s2945, 8
        %s2947 = scalar_lea.vmem [#allocation7], %s2946
        // Predicated region
        $region41: #{tpu_custom_call.1} parent=31 // pred_check
          %p2948 = pneg %p107
        $region42: #{tpu_custom_call.1} parent=31 // pred_check_branch
          %2950 = sbr.rel (%p2948) target = $region44
        $region43: #{tpu_custom_call.1} parent=31 // pred_region
          %s2952 = ssub.s32 128, 128
          %2953 = vsyncadd %s2944, %s2952
          %s2954 = smul.addr %s21, 128
          %s2955 = scalar_lea.hbm %s3, %s2954
          %s2957 = sshll.u32 %s2947, 4
          %s2958 = int_to_ptr.vmem [resolvable:$true] %s2957
          %2960 = dma.vmem_to_hbm [thread:$0]  %s2958, 128, %s2955, %s2944
        $region44: #{tpu_custom_call.1} parent=31 // pred_fallthru
          _
      $region32: #{tpu_custom_call.1} parent=5 // pred_fallthru
        _
      %p2961 = scmp.le.s32.totalorder 2, %s16
      // Predicated region
      $region45: #{tpu_custom_call.1} parent=5 // pred_check
        %p2962 = pneg %p2961
      $region46: #{tpu_custom_call.1} parent=5 // pred_check_branch
        %2964 = sbr.rel (%p2962) target = $region48
      $region47: #{tpu_custom_call.1} parent=5 // pred_region
        %s2965 = ssub.s32 %s16, 2
        // Predicated region
        $region49: #{tpu_custom_call.1} parent=47 // pred_check
          %p2966 = pneg %p113
        $region50: #{tpu_custom_call.1} parent=47 // pred_check_branch
          %2968 = sbr.rel (%p2966) target = $region52
        $region51: #{tpu_custom_call.1} parent=47 // pred_region
          %s2969 = sand.u32 %s98, 1
          %s2970 = scalar_lea.sflag [#allocation4], %s2969
          %s2971 = sand.u32 %s98, 1
          %s2972 = smul.addr %s2971, 8
          %s2973 = scalar_lea.vmem [#allocation7], %s2972
          %2974 = dma.done %s2970, 128
        $region52: #{tpu_custom_call.1} parent=47 // pred_fallthru
          _
      $region48: #{tpu_custom_call.1} parent=5 // pred_fallthru
        _
    $region6: #{tpu_custom_call.1} parent=1 // loop_footer
      %s20 = sadd.s32 1, %s16
    $region7: #{tpu_custom_call.1} parent=1 // loop_footer_branch
      %15 = sbr.rel target = $region3
    $region8: #{tpu_custom_call.1} parent=1 // loop_exit
      _
    %2975 = vsyncpa [#allocation3], 1
    %s2976 = scalar_lea.sflag [#allocation3], 1
    %2977 = vsyncpa %s2976, 1
    %2978 = vsyncpa [#allocation6], 1
    %2979 = vsyncpa [#allocation4], 1
    %s2980 = scalar_lea.sflag [#allocation4], 1
    %2981 = vsyncpa %s2980, 1

</llo_original>
